<compile_context>
chip_gen: v5e
topology: v5e:2x2
jax: 0.10.0
libtpu: 0.0.40
codegen_flags: <defaults>
</compile_context>

<pallas_src>
import functools
import math

import numpy as np
import jax
import jax.numpy as jnp
from jax.experimental import pallas as pl
from jax.experimental.pallas import tpu as pltpu

_LANES = 128


def _round_up(v, m):
    return ((v + m - 1) // m) * m


def _freq_bands(n_freqs, logscale):
    """Frequency bands, exactly as the torch module derives them."""
    if logscale:
        return tuple(float(2.0 ** v) for v in np.linspace(0.0, n_freqs - 1, n_freqs))
    return tuple(float(v) for v in np.linspace(1.0, 2.0 ** (n_freqs - 1), n_freqs))


def _pick_tile_rows(rows, desired_rows, budget_rows):
    """Pick a row-tile size (multiple of 8, <= budget). Prefer an exact divisor of
    `rows` so the grid has no padded tail (avoids a post-kernel slice copy of the
    21x-amplified output)."""
    cap = min(_round_up(desired_rows, 8), budget_rows, _round_up(rows, 8))
    cap = max(8, (cap // 8) * 8)
    floor = max(8, min(cap, max(cap // 2, 256)))
    t = cap
    while t >= floor:
        if rows % t == 0:
            return t
        t -= 8
    return cap  # accept padding (wrapper will slice)


def _embedding_kernel(x_ref, out_ref, *, freqs, logscale, resync_every,
                      chunk_rows, n_chunks):
    """One row tile.

    x_ref   : (TR, 128)        input tile (flattened elements)
    out_ref : (K, TR, 128)     output slab; plane 0 = x, plane 2k+1 = sin(f_k x),
                               plane 2k+2 = cos(f_k x)   (matches torch.cat order)

    The inner pl.loop over `chunk_rows`-row sub-chunks bounds the live ranges of the
    sin/cos ladder state (x, s, c stay within a handful of vregs per chunk) while the
    outer DMA tile stays large.
    """
    out_dtype = out_ref.dtype

    def emit(plane, r0, val):
        out_ref[plane, pl.ds(r0, chunk_rows), :] = val.astype(out_dtype)

    @pl.loop(0, n_chunks)
    def _(ci):
        r0 = pl.multiple_of(ci * chunk_rows, chunk_rows)
        x = x_ref[pl.ds(r0, chunk_rows), :].astype(jnp.float32)
        emit(0, r0, x)

        if logscale:
            # freqs are exactly 2^0, 2^1, ...: double-angle recurrence between anchors,
            # re-anchoring with an exact sin/cos every `resync_every` octaves to bound
            # accumulated error (error ~ 2^(steps since anchor) * 1 ulp).
            s = c = None
            for k, f in enumerate(freqs):
                if k % resync_every == 0:
                    fx = f * x
                    s = jnp.sin(fx)
                    c = jnp.cos(fx)
                else:
                    s, c = 2.0 * s * c, c * c - s * s
                emit(1 + 2 * k, r0, s)
                emit(2 + 2 * k, r0, c)
        else:
            for k, f in enumerate(freqs):
                fx = f * x
                emit(1 + 2 * k, r0, jnp.sin(fx))
                emit(2 + 2 * k, r0, jnp.cos(fx))


def nerf_embedding(x, n_freqs, logscale=True, *, out_dtype=None, block_rows=1024,
                   resync_every=5, transposed_output=False, use_pallas=None,
                   min_pallas_elements=65536):
    """Pallas TPU implementation of Embedding.forward from models/nerf.py.

    x: (B, in_channels)
    Returns (B, in_channels * (2*n_freqs + 1)) in the exact torch.cat order, or its
    transpose (out_c, B) when `transposed_output=True` (zero-extra-HBM-pass layout that
    a consuming matmul can fold in).
    """
    assert x.ndim == 2, "Embedding expects x of shape (B, in_channels)"
    B, in_c = x.shape
    k_planes = 2 * n_freqs + 1
    out_c = in_c * k_planes
    out_dtype = x.dtype if out_dtype is None else jnp.dtype(out_dtype)
    freqs = _freq_bands(n_freqs, logscale)
    resync = n_freqs if resync_every is None else max(1, int(resync_every))

    n = B * in_c
    if use_pallas is None:
        use_pallas = n >= min_pallas_elements
    if not use_pallas:
        # Small-input fallback: pallas_call fixed overhead + layout plumbing dominates.
        out = nerf_embedding_ref(x, n_freqs, logscale).astype(out_dtype)
        return out.T if transposed_output else out

    # ---- lane-dense flattening ---------------------------------------------------
    # default (torch layout): batch-major flatten; transposed_output: channel-major
    # flatten so the kernel slab reshapes to out.T with no transpose at all.
    rows = -(-n // _LANES)

    in_item = jnp.dtype(x.dtype).itemsize
    out_item = jnp.dtype(out_dtype).itemsize
    # Double-buffered input + output pipeline bytes per tile row.
    bytes_per_row = 2 * _LANES * (in_item + k_planes * out_item)

    try:
        vmem_cap = int(pltpu.get_tpu_info().vmem_capacity_bytes)
    except Exception:
        vmem_cap = 64 * 1024 * 1024  # conservative: v7x per-TC physical VMEM
    # Keep the pipelined tiles within ~40% of physical VMEM, never more than 26 MiB
    # (so a tile tuned on v5e/v6e's 128 MiB never breaks v7x's 64 MiB).
    tile_budget = min((vmem_cap * 2) // 5, 26 * 1024 * 1024)
    budget_rows = max(8, (tile_budget // bytes_per_row) // 8 * 8)

    tr = _pick_tile_rows(rows, block_rows, budget_rows)
    rows_pad = _round_up(rows, tr)
    n_pad = rows_pad * _LANES

    vmem_limit = int(min(vmem_cap, max(16 * 1024 * 1024,
                                       tr * bytes_per_row + 8 * 1024 * 1024)))

    x_flat = (x.T if transposed_output else x).reshape(-1)
    if n_pad != n:
        x_flat = jnp.pad(x_flat, (0, n_pad - n))
    x2d = x_flat.reshape(rows_pad, _LANES)

    # Inner sub-chunk: <= 64 rows (<= 8 vregs per live f32 array) and divides the tile.
    chunk_rows = math.gcd(tr, 64)
    n_chunks = tr // chunk_rows

    kernel = functools.partial(
        _embedding_kernel, freqs=freqs, logscale=logscale, resync_every=resync,
        chunk_rows=chunk_rows, n_chunks=n_chunks)

    # TODO(synk): verify on v7x that the 1-D "parallel" grid is split across both
    # TensorCores; if the trace shows one TC, add an explicit core-split leading grid
    # axis (pltpu.CORE_PARALLEL).
    out3d = pl.pallas_call(
        kernel,
        out_shape=jax.ShapeDtypeStruct((k_planes, rows_pad, _LANES), out_dtype),
        grid_spec=pltpu.PrefetchScalarGridSpec(
            num_scalar_prefetch=0,
            grid=(rows_pad // tr,),
            in_specs=[pl.BlockSpec((tr, _LANES), lambda i: (i, 0))],
            out_specs=pl.BlockSpec((k_planes, tr, _LANES), lambda i: (0, i, 0)),
        ),
        compiler_params=pltpu.CompilerParams(
            dimension_semantics=("parallel",),
            vmem_limit_bytes=vmem_limit,
        ),
    )(x2d)

    # ---- layout plumbing back to the requested convention --------------------------
    flat = out3d.reshape(k_planes, n_pad)
    if n_pad != n:
        flat = flat[:, :n]
    if transposed_output:
        # (K, in_c, B) -> (out_c, B): pure metadata (channel index j = k*in_c + c
        # matches torch.cat order exactly); no transpose pass over the 21x output.
        return flat.reshape(out_c, B)
    # Exact torch layout needs one XLA transpose pass (the interleave granularity of
    # in_c elements cannot be written lane-densely by the kernel).
    out = flat.reshape(k_planes, B, in_c)
    out = jnp.transpose(out, (1, 0, 2)).reshape(B, out_c)
    return out


def nerf_embedding_ref(x, n_freqs, logscale=True):
    """Pure-JAX reference mirroring the PyTorch forward exactly."""
    outs = [x]
    for f in _freq_bands(n_freqs, logscale):
        outs.append(jnp.sin(f * x))
        outs.append(jnp.cos(f * x))
    return jnp.concatenate(outs, axis=-1)


if __name__ == "__main__":
    # Classic NeRF xyz embedding: 3 input channels, 10 frequency bands
    # -> out_channels = 3 * (2*10 + 1) = 63.  B kept modest for the self-test; the
    # Pallas path is forced (small inputs would normally take the JAX fallback).
    B, IN_C, N_FREQS = 2048, 3, 10
    key = jax.random.PRNGKey(0)
    x = jax.random.normal(key, (B, IN_C), dtype=jnp.float32)
    ref = nerf_embedding_ref(x, N_FREQS, logscale=True)

    # 1) Default torch-layout output via the Pallas kernel.
    out = jax.block_until_ready(
        nerf_embedding(x, N_FREQS, logscale=True, use_pallas=True))
    assert out.shape == (B, IN_C * (2 * N_FREQS + 1))
    # Tolerance sized for the double-angle octave ladder (resync_every=5 -> error ~4e-6).
    np.testing.assert_allclose(np.asarray(out), np.asarray(ref), rtol=1e-5, atol=3e-5)

    # 2) Zero-extra-pass transposed layout (== out.T) for consumers that fold it in.
    out_t = jax.block_until_ready(
        nerf_embedding(x, N_FREQS, logscale=True, use_pallas=True,
                       transposed_output=True))
    assert out_t.shape == (IN_C * (2 * N_FREQS + 1), B)
    np.testing.assert_allclose(np.asarray(out_t), np.asarray(ref).T,
                               rtol=1e-5, atol=3e-5)

    # 3) bf16 output (halves the dominant HBM write traffic for bf16 MLPs).
    out_bf16 = jax.block_until_ready(
        nerf_embedding(x, N_FREQS, logscale=True, use_pallas=True,
                       out_dtype=jnp.bfloat16))
    np.testing.assert_allclose(np.asarray(out_bf16, dtype=np.float32),
                               np.asarray(ref), rtol=2e-2, atol=2e-2)

    # 4) Linear (non-logscale) frequency bands through the kernel path.
    out_lin = jax.block_until_ready(
        nerf_embedding(x, 6, logscale=False, use_pallas=True))
    ref_lin = nerf_embedding_ref(x, 6, logscale=False)
    np.testing.assert_allclose(np.asarray(out_lin), np.asarray(ref_lin),
                               rtol=1e-6, atol=2e-6)

    # 5) Small-input auto fallback (pure-JAX path).
    x_small = jax.random.normal(jax.random.PRNGKey(1), (16, 3), dtype=jnp.float32)
    out_small = jax.block_until_ready(nerf_embedding(x_small, 4, logscale=True))
    ref_small = nerf_embedding_ref(x_small, 4, logscale=True)
    np.testing.assert_allclose(np.asarray(out_small), np.asarray(ref_small),
                               rtol=1e-6, atol=1e-6)

    print("KERNEL_OK")
</pallas_src>

<mosaic_0001>
module attributes {stable_mosaic.version = 11 : i64} {
  func.func @_embedding_kernel(%arg0: i32, %arg1: memref<48x128xf32, #tpu.memory_space<vmem>>, %arg2: memref<21x48x128xf32, #tpu.memory_space<vmem>>) attributes {dimension_semantics = [#tpu.dimension_semantics<parallel>], iteration_bounds = array<i64: 1>, scalar_prefetch = 0 : i64, scratch_operands = 0 : i64, tpu.core_type = #tpu.core_type<tc>, window_params = [{transform_indices = @transform_0, window_bounds = array<i64: 48, 128>}, {transform_indices = @transform_1, window_bounds = array<i64: 21, 48, 128>}]} {
    %c0_i32 = arith.constant 0 : i32
    %c3_i32 = arith.constant 3 : i32
    %0 = arith.addi %c0_i32, %c3_i32 : i32
    %c1_i32 = arith.constant 1 : i32
    scf.for %arg3 = %c0_i32 to %0 step %c1_i32  : i32 {
      %c1_i32_1 = arith.constant 1 : i32
      %1 = arith.muli %arg3, %c1_i32_1 : i32
      %c0_i32_2 = arith.constant 0 : i32
      %2 = arith.addi %c0_i32_2, %1 : i32
      %c16_i32 = arith.constant 16 : i32
      %3 = arith.muli %2, %c16_i32 : i32
      %4 = tpu.assume_multiple %3, 16 : i32
      %5 = arith.index_cast %4 : i32 to index
      %c0 = arith.constant 0 : index
      %6 = vector.load %arg1[%5, %c0] : memref<48x128xf32, #tpu.memory_space<vmem>>, vector<16x128xf32>
      %c0_3 = arith.constant 0 : index
      %7 = arith.index_cast %4 : i32 to index
      %c0_4 = arith.constant 0 : index
      %8 = vector.load %arg2[%c0_3, %7, %c0_4] : memref<21x48x128xf32, #tpu.memory_space<vmem>>, vector<1x16x128xf32>
      %9 = vector.shape_cast %8 : vector<1x16x128xf32> to vector<16x128xf32>
      %10 = vector.shape_cast %6 : vector<16x128xf32> to vector<1x16x128xf32>
      tpu.vector_store %arg2[%c0_3, %7, %c0_4], %10 {strides = array<i32>} : memref<21x48x128xf32, #tpu.memory_space<vmem>>, vector<1x16x128xf32>,
      %cst = arith.constant 1.000000e+00 : f32
      %11 = vector.broadcast %cst : f32 to vector<16x128xf32>
      %12 = arith.mulf %11, %6 : vector<16x128xf32>
      %13 = math.sin %12 : vector<16x128xf32>
      %14 = math.cos %12 : vector<16x128xf32>
      %c1 = arith.constant 1 : index
      %15 = arith.index_cast %4 : i32 to index
      %c0_5 = arith.constant 0 : index
      %16 = vector.load %arg2[%c1, %15, %c0_5] : memref<21x48x128xf32, #tpu.memory_space<vmem>>, vector<1x16x128xf32>
      %17 = vector.shape_cast %16 : vector<1x16x128xf32> to vector<16x128xf32>
      %18 = vector.shape_cast %13 : vector<16x128xf32> to vector<1x16x128xf32>
      tpu.vector_store %arg2[%c1, %15, %c0_5], %18 {strides = array<i32>} : memref<21x48x128xf32, #tpu.memory_space<vmem>>, vector<1x16x128xf32>,
      %c2 = arith.constant 2 : index
      %19 = arith.index_cast %4 : i32 to index
      %c0_6 = arith.constant 0 : index
      %20 = vector.load %arg2[%c2, %19, %c0_6] : memref<21x48x128xf32, #tpu.memory_space<vmem>>, vector<1x16x128xf32>
      %21 = vector.shape_cast %20 : vector<1x16x128xf32> to vector<16x128xf32>
      %22 = vector.shape_cast %14 : vector<16x128xf32> to vector<1x16x128xf32>
      tpu.vector_store %arg2[%c2, %19, %c0_6], %22 {strides = array<i32>} : memref<21x48x128xf32, #tpu.memory_space<vmem>>, vector<1x16x128xf32>,
      %cst_7 = arith.constant 2.000000e+00 : f32
      %23 = vector.broadcast %cst_7 : f32 to vector<16x128xf32>
      %24 = arith.mulf %23, %13 : vector<16x128xf32>
      %25 = arith.mulf %24, %14 : vector<16x128xf32>
      %26 = arith.mulf %14, %14 : vector<16x128xf32>
      %27 = arith.mulf %13, %13 : vector<16x128xf32>
      %28 = arith.subf %26, %27 : vector<16x128xf32>
      %c3 = arith.constant 3 : index
      %29 = arith.index_cast %4 : i32 to index
      %c0_8 = arith.constant 0 : index
      %30 = vector.load %arg2[%c3, %29, %c0_8] : memref<21x48x128xf32, #tpu.memory_space<vmem>>, vector<1x16x128xf32>
      %31 = vector.shape_cast %30 : vector<1x16x128xf32> to vector<16x128xf32>
      %32 = vector.shape_cast %25 : vector<16x128xf32> to vector<1x16x128xf32>
      tpu.vector_store %arg2[%c3, %29, %c0_8], %32 {strides = array<i32>} : memref<21x48x128xf32, #tpu.memory_space<vmem>>, vector<1x16x128xf32>,
      %c4 = arith.constant 4 : index
      %33 = arith.index_cast %4 : i32 to index
      %c0_9 = arith.constant 0 : index
      %34 = vector.load %arg2[%c4, %33, %c0_9] : memref<21x48x128xf32, #tpu.memory_space<vmem>>, vector<1x16x128xf32>
      %35 = vector.shape_cast %34 : vector<1x16x128xf32> to vector<16x128xf32>
      %36 = vector.shape_cast %28 : vector<16x128xf32> to vector<1x16x128xf32>
      tpu.vector_store %arg2[%c4, %33, %c0_9], %36 {strides = array<i32>} : memref<21x48x128xf32, #tpu.memory_space<vmem>>, vector<1x16x128xf32>,
      %cst_10 = arith.constant 2.000000e+00 : f32
      %37 = vector.broadcast %cst_10 : f32 to vector<16x128xf32>
      %38 = arith.mulf %37, %25 : vector<16x128xf32>
      %39 = arith.mulf %38, %28 : vector<16x128xf32>
      %40 = arith.mulf %28, %28 : vector<16x128xf32>
      %41 = arith.mulf %25, %25 : vector<16x128xf32>
      %42 = arith.subf %40, %41 : vector<16x128xf32>
      %c5 = arith.constant 5 : index
      %43 = arith.index_cast %4 : i32 to index
      %c0_11 = arith.constant 0 : index
      %44 = vector.load %arg2[%c5, %43, %c0_11] : memref<21x48x128xf32, #tpu.memory_space<vmem>>, vector<1x16x128xf32>
      %45 = vector.shape_cast %44 : vector<1x16x128xf32> to vector<16x128xf32>
      %46 = vector.shape_cast %39 : vector<16x128xf32> to vector<1x16x128xf32>
      tpu.vector_store %arg2[%c5, %43, %c0_11], %46 {strides = array<i32>} : memref<21x48x128xf32, #tpu.memory_space<vmem>>, vector<1x16x128xf32>,
      %c6 = arith.constant 6 : index
      %47 = arith.index_cast %4 : i32 to index
      %c0_12 = arith.constant 0 : index
      %48 = vector.load %arg2[%c6, %47, %c0_12] : memref<21x48x128xf32, #tpu.memory_space<vmem>>, vector<1x16x128xf32>
      %49 = vector.shape_cast %48 : vector<1x16x128xf32> to vector<16x128xf32>
      %50 = vector.shape_cast %42 : vector<16x128xf32> to vector<1x16x128xf32>
      tpu.vector_store %arg2[%c6, %47, %c0_12], %50 {strides = array<i32>} : memref<21x48x128xf32, #tpu.memory_space<vmem>>, vector<1x16x128xf32>,
      %cst_13 = arith.constant 2.000000e+00 : f32
      %51 = vector.broadcast %cst_13 : f32 to vector<16x128xf32>
      %52 = arith.mulf %51, %39 : vector<16x128xf32>
      %53 = arith.mulf %52, %42 : vector<16x128xf32>
      %54 = arith.mulf %42, %42 : vector<16x128xf32>
      %55 = arith.mulf %39, %39 : vector<16x128xf32>
      %56 = arith.subf %54, %55 : vector<16x128xf32>
      %c7 = arith.constant 7 : index
      %57 = arith.index_cast %4 : i32 to index
      %c0_14 = arith.constant 0 : index
      %58 = vector.load %arg2[%c7, %57, %c0_14] : memref<21x48x128xf32, #tpu.memory_space<vmem>>, vector<1x16x128xf32>
      %59 = vector.shape_cast %58 : vector<1x16x128xf32> to vector<16x128xf32>
      %60 = vector.shape_cast %53 : vector<16x128xf32> to vector<1x16x128xf32>
      tpu.vector_store %arg2[%c7, %57, %c0_14], %60 {strides = array<i32>} : memref<21x48x128xf32, #tpu.memory_space<vmem>>, vector<1x16x128xf32>,
      %c8 = arith.constant 8 : index
      %61 = arith.index_cast %4 : i32 to index
      %c0_15 = arith.constant 0 : index
      %62 = vector.load %arg2[%c8, %61, %c0_15] : memref<21x48x128xf32, #tpu.memory_space<vmem>>, vector<1x16x128xf32>
      %63 = vector.shape_cast %62 : vector<1x16x128xf32> to vector<16x128xf32>
      %64 = vector.shape_cast %56 : vector<16x128xf32> to vector<1x16x128xf32>
      tpu.vector_store %arg2[%c8, %61, %c0_15], %64 {strides = array<i32>} : memref<21x48x128xf32, #tpu.memory_space<vmem>>, vector<1x16x128xf32>,
      %cst_16 = arith.constant 2.000000e+00 : f32
      %65 = vector.broadcast %cst_16 : f32 to vector<16x128xf32>
      %66 = arith.mulf %65, %53 : vector<16x128xf32>
      %67 = arith.mulf %66, %56 : vector<16x128xf32>
      %68 = arith.mulf %56, %56 : vector<16x128xf32>
      %69 = arith.mulf %53, %53 : vector<16x128xf32>
      %70 = arith.subf %68, %69 : vector<16x128xf32>
      %c9 = arith.constant 9 : index
      %71 = arith.index_cast %4 : i32 to index
      %c0_17 = arith.constant 0 : index
      %72 = vector.load %arg2[%c9, %71, %c0_17] : memref<21x48x128xf32, #tpu.memory_space<vmem>>, vector<1x16x128xf32>
      %73 = vector.shape_cast %72 : vector<1x16x128xf32> to vector<16x128xf32>
      %74 = vector.shape_cast %67 : vector<16x128xf32> to vector<1x16x128xf32>
      tpu.vector_store %arg2[%c9, %71, %c0_17], %74 {strides = array<i32>} : memref<21x48x128xf32, #tpu.memory_space<vmem>>, vector<1x16x128xf32>,
      %c10 = arith.constant 10 : index
      %75 = arith.index_cast %4 : i32 to index
      %c0_18 = arith.constant 0 : index
      %76 = vector.load %arg2[%c10, %75, %c0_18] : memref<21x48x128xf32, #tpu.memory_space<vmem>>, vector<1x16x128xf32>
      %77 = vector.shape_cast %76 : vector<1x16x128xf32> to vector<16x128xf32>
      %78 = vector.shape_cast %70 : vector<16x128xf32> to vector<1x16x128xf32>
      tpu.vector_store %arg2[%c10, %75, %c0_18], %78 {strides = array<i32>} : memref<21x48x128xf32, #tpu.memory_space<vmem>>, vector<1x16x128xf32>,
      %cst_19 = arith.constant 3.200000e+01 : f32
      %79 = vector.broadcast %cst_19 : f32 to vector<16x128xf32>
      %80 = arith.mulf %79, %6 : vector<16x128xf32>
      %81 = math.sin %80 : vector<16x128xf32>
      %82 = math.cos %80 : vector<16x128xf32>
      %c11 = arith.constant 11 : index
      %83 = arith.index_cast %4 : i32 to index
      %c0_20 = arith.constant 0 : index
      %84 = vector.load %arg2[%c11, %83, %c0_20] : memref<21x48x128xf32, #tpu.memory_space<vmem>>, vector<1x16x128xf32>
      %85 = vector.shape_cast %84 : vector<1x16x128xf32> to vector<16x128xf32>
      %86 = vector.shape_cast %81 : vector<16x128xf32> to vector<1x16x128xf32>
      tpu.vector_store %arg2[%c11, %83, %c0_20], %86 {strides = array<i32>} : memref<21x48x128xf32, #tpu.memory_space<vmem>>, vector<1x16x128xf32>,
      %c12 = arith.constant 12 : index
      %87 = arith.index_cast %4 : i32 to index
      %c0_21 = arith.constant 0 : index
      %88 = vector.load %arg2[%c12, %87, %c0_21] : memref<21x48x128xf32, #tpu.memory_space<vmem>>, vector<1x16x128xf32>
      %89 = vector.shape_cast %88 : vector<1x16x128xf32> to vector<16x128xf32>
      %90 = vector.shape_cast %82 : vector<16x128xf32> to vector<1x16x128xf32>
      tpu.vector_store %arg2[%c12, %87, %c0_21], %90 {strides = array<i32>} : memref<21x48x128xf32, #tpu.memory_space<vmem>>, vector<1x16x128xf32>,
      %cst_22 = arith.constant 2.000000e+00 : f32
      %91 = vector.broadcast %cst_22 : f32 to vector<16x128xf32>
      %92 = arith.mulf %91, %81 : vector<16x128xf32>
      %93 = arith.mulf %92, %82 : vector<16x128xf32>
      %94 = arith.mulf %82, %82 : vector<16x128xf32>
      %95 = arith.mulf %81, %81 : vector<16x128xf32>
      %96 = arith.subf %94, %95 : vector<16x128xf32>
      %c13 = arith.constant 13 : index
      %97 = arith.index_cast %4 : i32 to index
      %c0_23 = arith.constant 0 : index
      %98 = vector.load %arg2[%c13, %97, %c0_23] : memref<21x48x128xf32, #tpu.memory_space<vmem>>, vector<1x16x128xf32>
      %99 = vector.shape_cast %98 : vector<1x16x128xf32> to vector<16x128xf32>
      %100 = vector.shape_cast %93 : vector<16x128xf32> to vector<1x16x128xf32>
      tpu.vector_store %arg2[%c13, %97, %c0_23], %100 {strides = array<i32>} : memref<21x48x128xf32, #tpu.memory_space<vmem>>, vector<1x16x128xf32>,
      %c14 = arith.constant 14 : index
      %101 = arith.index_cast %4 : i32 to index
      %c0_24 = arith.constant 0 : index
      %102 = vector.load %arg2[%c14, %101, %c0_24] : memref<21x48x128xf32, #tpu.memory_space<vmem>>, vector<1x16x128xf32>
      %103 = vector.shape_cast %102 : vector<1x16x128xf32> to vector<16x128xf32>
      %104 = vector.shape_cast %96 : vector<16x128xf32> to vector<1x16x128xf32>
      tpu.vector_store %arg2[%c14, %101, %c0_24], %104 {strides = array<i32>} : memref<21x48x128xf32, #tpu.memory_space<vmem>>, vector<1x16x128xf32>,
      %cst_25 = arith.constant 2.000000e+00 : f32
      %105 = vector.broadcast %cst_25 : f32 to vector<16x128xf32>
      %106 = arith.mulf %105, %93 : vector<16x128xf32>
      %107 = arith.mulf %106, %96 : vector<16x128xf32>
      %108 = arith.mulf %96, %96 : vector<16x128xf32>
      %109 = arith.mulf %93, %93 : vector<16x128xf32>
      %110 = arith.subf %108, %109 : vector<16x128xf32>
      %c15 = arith.constant 15 : index
      %111 = arith.index_cast %4 : i32 to index
      %c0_26 = arith.constant 0 : index
      %112 = vector.load %arg2[%c15, %111, %c0_26] : memref<21x48x128xf32, #tpu.memory_space<vmem>>, vector<1x16x128xf32>
      %113 = vector.shape_cast %112 : vector<1x16x128xf32> to vector<16x128xf32>
      %114 = vector.shape_cast %107 : vector<16x128xf32> to vector<1x16x128xf32>
      tpu.vector_store %arg2[%c15, %111, %c0_26], %114 {strides = array<i32>} : memref<21x48x128xf32, #tpu.memory_space<vmem>>, vector<1x16x128xf32>,
      %c16 = arith.constant 16 : index
      %115 = arith.index_cast %4 : i32 to index
      %c0_27 = arith.constant 0 : index
      %116 = vector.load %arg2[%c16, %115, %c0_27] : memref<21x48x128xf32, #tpu.memory_space<vmem>>, vector<1x16x128xf32>
      %117 = vector.shape_cast %116 : vector<1x16x128xf32> to vector<16x128xf32>
      %118 = vector.shape_cast %110 : vector<16x128xf32> to vector<1x16x128xf32>
      tpu.vector_store %arg2[%c16, %115, %c0_27], %118 {strides = array<i32>} : memref<21x48x128xf32, #tpu.memory_space<vmem>>, vector<1x16x128xf32>,
      %cst_28 = arith.constant 2.000000e+00 : f32
      %119 = vector.broadcast %cst_28 : f32 to vector<16x128xf32>
      %120 = arith.mulf %119, %107 : vector<16x128xf32>
      %121 = arith.mulf %120, %110 : vector<16x128xf32>
      %122 = arith.mulf %110, %110 : vector<16x128xf32>
      %123 = arith.mulf %107, %107 : vector<16x128xf32>
      %124 = arith.subf %122, %123 : vector<16x128xf32>
      %c17 = arith.constant 17 : index
      %125 = arith.index_cast %4 : i32 to index
      %c0_29 = arith.constant 0 : index
      %126 = vector.load %arg2[%c17, %125, %c0_29] : memref<21x48x128xf32, #tpu.memory_space<vmem>>, vector<1x16x128xf32>
      %127 = vector.shape_cast %126 : vector<1x16x128xf32> to vector<16x128xf32>
      %128 = vector.shape_cast %121 : vector<16x128xf32> to vector<1x16x128xf32>
      tpu.vector_store %arg2[%c17, %125, %c0_29], %128 {strides = array<i32>} : memref<21x48x128xf32, #tpu.memory_space<vmem>>, vector<1x16x128xf32>,
      %c18 = arith.constant 18 : index
      %129 = arith.index_cast %4 : i32 to index
      %c0_30 = arith.constant 0 : index
      %130 = vector.load %arg2[%c18, %129, %c0_30] : memref<21x48x128xf32, #tpu.memory_space<vmem>>, vector<1x16x128xf32>
      %131 = vector.shape_cast %130 : vector<1x16x128xf32> to vector<16x128xf32>
      %132 = vector.shape_cast %124 : vector<16x128xf32> to vector<1x16x128xf32>
      tpu.vector_store %arg2[%c18, %129, %c0_30], %132 {strides = array<i32>} : memref<21x48x128xf32, #tpu.memory_space<vmem>>, vector<1x16x128xf32>,
      %cst_31 = arith.constant 2.000000e+00 : f32
      %133 = vector.broadcast %cst_31 : f32 to vector<16x128xf32>
      %134 = arith.mulf %133, %121 : vector<16x128xf32>
      %135 = arith.mulf %134, %124 : vector<16x128xf32>
      %136 = arith.mulf %124, %124 : vector<16x128xf32>
      %137 = arith.mulf %121, %121 : vector<16x128xf32>
      %138 = arith.subf %136, %137 : vector<16x128xf32>
      %c19 = arith.constant 19 : index
      %139 = arith.index_cast %4 : i32 to index
      %c0_32 = arith.constant 0 : index
      %140 = vector.load %arg2[%c19, %139, %c0_32] : memref<21x48x128xf32, #tpu.memory_space<vmem>>, vector<1x16x128xf32>
      %141 = vector.shape_cast %140 : vector<1x16x128xf32> to vector<16x128xf32>
      %142 = vector.shape_cast %135 : vector<16x128xf32> to vector<1x16x128xf32>
      tpu.vector_store %arg2[%c19, %139, %c0_32], %142 {strides = array<i32>} : memref<21x48x128xf32, #tpu.memory_space<vmem>>, vector<1x16x128xf32>,
      %c20 = arith.constant 20 : index
      %143 = arith.index_cast %4 : i32 to index
      %c0_33 = arith.constant 0 : index
      %144 = vector.load %arg2[%c20, %143, %c0_33] : memref<21x48x128xf32, #tpu.memory_space<vmem>>, vector<1x16x128xf32>
      %145 = vector.shape_cast %144 : vector<1x16x128xf32> to vector<16x128xf32>
      %146 = vector.shape_cast %138 : vector<16x128xf32> to vector<1x16x128xf32>
      tpu.vector_store %arg2[%c20, %143, %c0_33], %146 {strides = array<i32>} : memref<21x48x128xf32, #tpu.memory_space<vmem>>, vector<1x16x128xf32>,
    }
    %c3_i32_0 = arith.constant 3 : i32
    return
  }
  func.func @transform_0(%arg0: i32) -> (i32, i32) {
    %c0_i32 = arith.constant 0 : i32
    %c0_i32_0 = arith.constant 0 : i32
    return %arg0, %c0_i32 : i32, i32
  }
  func.func @transform_1(%arg0: i32) -> (i32, i32, i32) {
    %c0_i32 = arith.constant 0 : i32
    %c0_i32_0 = arith.constant 0 : i32
    %c0_i32_1 = arith.constant 0 : i32
    return %c0_i32, %arg0, %c0_i32_0 : i32, i32, i32
  }
}

</mosaic_0001>

<llo_original>
// kernel: tpu_custom_call.1
$region0: #{tpu_custom_call.1}
  #allocation0 [shape = 'u32[]', space=smem, size = 0x4, offset = 0x4, fixed_abs, tag = 'smem constant byte address 0x4 - core index']
  #allocation1 [shape = 'u32[72,128]{1,0:T(1,128)}', space=vmem, size = 0x9000, scoped, tag = 'internal scratch']
  %s0 = inlined_call_operand.hbm [shape: f32[48,128], index: 0, kind: input, shape index: {}]
  %s1 = inlined_call_operand.hbm [shape: f32[21,48,128], index: 1, kind: output, shape index: {}]
  %s2 = sld [smem:[#allocation0]]
  $region25: #{tpu_custom_call.1} parent=0
    _
  %s4 = ssub.s32 1, %s2
  %s5 = scalar_select 0, %s4, %s2
  $region1: #{tpu_custom_call.1} parent=0
    #allocation2 [shape = 'u8[24576]{0}', space=vmem, size = 0x6000, scoped, tag = 'input window, operand 0, single buffered']
    #allocation3 [shape = 's32[1]{0}', space=sflag, size = 0x4, scoped, tag = 'scoped memory for tpu_custom_call.1']
    #allocation4 [shape = 's32[1]{0}', space=sflag, size = 0x4, scoped, tag = 'scoped memory for tpu_custom_call.1']
    #allocation5 [shape = 'u8[516096]{0}', space=vmem, size = 0x7e000, scoped, tag = 'output window, operand 0, single buffered']
    %6 = vsyncpa [#allocation3], 0
    %7 = vsyncpa [#allocation4], 0
    // Predicated region
    $region2: #{tpu_custom_call.1} parent=1 // pred_check
      _
    $region3: #{tpu_custom_call.1} parent=1 // pred_check_branch
      %9 = sbr.rel (0) target = $region5
    $region4: #{tpu_custom_call.1} parent=1 // pred_region
      %11 = vsyncadd [#allocation3], 0
      %s12 = sshll.u32 %s0, 4
      %s13 = int_to_ptr.hbm [resolvable:$true] %s12
      %s14 = sshll.u32 [#allocation2], 4
      %s15 = int_to_ptr.vmem [resolvable:$true] %s14
      %20 = dma.hbm_to_vmem [thread:$0]  %s13, 768, %s15, [#allocation3], 128, 128, 8
    $region5: #{tpu_custom_call.1} parent=1 // pred_fallthru
      _
    // Predicated region
    $region6: #{tpu_custom_call.1} parent=1 // pred_check
      _
    $region7: #{tpu_custom_call.1} parent=1 // pred_check_branch
      %22 = sbr.rel (0) target = $region9
    $region8: #{tpu_custom_call.1} parent=1 // pred_region
      %24 = dma.done [#allocation3], 768
    $region9: #{tpu_custom_call.1} parent=1 // pred_fallthru
      _
    loop: start=0, step=1, limit=3
    $region10: #{tpu_custom_call.1} parent=1 // loop_pre_header
      _
    $region11: #{tpu_custom_call.1} parent=1 // loop_header
      %s26 = sphi 0, %s30
      %p27 = scmp.ge.s32.totalorder %s26, 3
    $region12: #{tpu_custom_call.1} parent=1 // loop_header_branch
      %29 = sbr.rel (%p27) target = $region16
    $region13: #{tpu_custom_call.1} parent=1 // loop_body
      %s31 = smul.u32 %s26, 16
      %s32 = scalar_lea.vmem [#allocation2], %s31
      %v33 = vld [vmem:[%s32] sm:$0xff]
      %v34 = vld [vmem:[%s32 + $0x8] sm:$0xff]
      %s35 = scalar_lea.vmem [#allocation5], %s31
      %36 = vst [vmem:[%s35] sm:$0xff] %v33
      %37 = vst [vmem:[%s35 + $0x8] sm:$0xff] %v34
      %v38 = vand.u32 2147483647, %v33
      %vm39 = vcmp.le.f32.partialorder %v38, 0.7853982
      %vm40 = vcmp.lt.s32.totalorder %v33, 0
      %v41 = vand.u32 %v33, 2139095040
      %v42 = vshrl.u32 %v41, 23
      %v43 = vsub.s32 %v42, 127
      %v44 = vand.u32 2147483647, %v33
      %v45 = vand.u32 %v44, 8388607
      %v46 = vor.u32 %v45, 8388608
      %v47 = vsub.s32 0, %v46
      %v48 = vadd.s32 %v43, 1
      %vm49 = vcmp.gt.s32.totalorder %v48, 0
      %v50 = vsel %vm49, %v48, 0
      %v51 = vshrl.u32 %v50, 5
      %v52 = vand.u32 %v50, 31
      %v53 = vsub.s32 32, %v52
      %v54 = vshrl.u32 683565275, %v53
      %v55 = vshll.u32 683565275, %v52
      %v56 = vshrl.u32 2475754826, %v53
      %v57 = vor.u32 %v55, %v56
      %v58 = vshll.u32 2475754826, %v52
      %v59 = vshrl.u32 2131351028, %v53
      %v60 = vor.u32 %v58, %v59
      %v61 = vshll.u32 2131351028, %v52
      %v62 = vshrl.u32 2102212464, %v53
      %v63 = vor.u32 %v61, %v62
      %v64 = vshll.u32 2102212464, %v52
      %v65 = vshrl.u32 920167782, %v53
      %v66 = vor.u32 %v64, %v65
      %v67 = vshll.u32 920167782, %v52
      %v68 = vshrl.u32 1326507024, %v53
      %v69 = vor.u32 %v67, %v68
      %vm70 = vcmp.lt.s32.totalorder %v51, 1
      %vm71 = vcmp.lt.s32.totalorder %v51, 2
      %vm72 = vcmp.lt.s32.totalorder %v51, 3
      %vm73 = vcmp.lt.s32.totalorder %v51, 4
      %v74 = vsel %vm70, %v54, %v57
      %v75 = vsel %vm73, %v63, 2102212464
      %v76 = vsel %vm72, %v60, %v75
      %v77 = vsel %vm71, %v74, %v76
      %v78 = vsel %vm70, %v57, %v60
      %v79 = vsel %vm73, %v66, 920167782
      %v80 = vsel %vm72, %v63, %v79
      %v81 = vsel %vm71, %v78, %v80
      %v82 = vsel %vm70, %v60, %v63
      %v83 = vsel %vm73, %v69, 1326507024
      %v84 = vsel %vm72, %v66, %v83
      %v85 = vsel %vm71, %v82, %v84
      %v86 = vshll.u32 %v46, 8
      %v87 = vand.u32 %v86, 65535
      %v88 = vshrl.u32 %v86, 16
      %v89 = vand.u32 %v85, 65535
      %v90 = vshrl.u32 %v85, 16
      %v91 = vmul.u32 %v87, %v89
      %v92 = vmul.u32 %v87, %v90
      %v93 = vmul.u32 %v88, %v89
      %v94 = vmul.u32 %v88, %v90
      %v95 = vshll.u32 %v92, 16
      %v96 = vshrl.u32 %v92, 16
      %v97 = vshll.u32 %v93, 16
      %v98 = vshrl.u32 %v93, 16
      %vm99 = vc.u32 %v91, %v95
      %v100 = vsel %vm99, 1, 0
      %v101 = vadd.s32 %v91, %v95
      %v102 = vadd.s32 %v94, %v100
      %vm103 = vc.u32 %v101, %v97
      %v104 = vsel %vm103, 1, 0
      %v105 = vadd.s32 %v101, %v97
      %v106 = vadd.s32 %v102, %v104
      %v107 = vadd.s32 %v106, %v96
      %v108 = vadd.s32 %v107, %v98
      %v109 = vand.u32 %v86, 65535
      %v110 = vshrl.u32 %v86, 16
      %v111 = vand.u32 %v81, 65535
      %v112 = vshrl.u32 %v81, 16
      %v113 = vmul.u32 %v109, %v111
      %v114 = vmul.u32 %v109, %v112
      %v115 = vmul.u32 %v110, %v111
      %v116 = vmul.u32 %v110, %v112
      %v117 = vshll.u32 %v114, 16
      %v118 = vshrl.u32 %v114, 16
      %v119 = vshll.u32 %v115, 16
      %v120 = vshrl.u32 %v115, 16
      %vm121 = vc.u32 %v113, %v117
      %v122 = vsel %vm121, 1, 0
      %v123 = vadd.s32 %v113, %v117
      %v124 = vadd.s32 %v116, %v122
      %vm125 = vc.u32 %v123, %v119
      %v126 = vsel %vm125, 1, 0
      %v127 = vadd.s32 %v123, %v119
      %v128 = vadd.s32 %v124, %v126
      %v129 = vadd.s32 %v128, %v118
      %v130 = vadd.s32 %v129, %v120
      %v131 = vmul.u32 %v86, %v77
      %v132 = vadd.s32 %v108, %v127
      %vm133 = vc.u32 %v108, %v127
      %v134 = vadd.s32 %v130, 1
      %v135 = vsel %vm133, %v134, %v130
      %v136 = vadd.s32 %v131, %v135
      %v137 = vadd.s32 %v136, 536870912
      %v138 = vshrl.u32 %v137, 30
      %v139 = vshll.u32 %v138, 30
      %v140 = vsub.s32 %v136, %v139
      %vm141 = vcmp.lt.s32.totalorder %v140, 0
      %v142 = vsub.s32 0, %v140
      %v143 = vsel %vm141, %v142, %v140
      %v144 = vclz %v143
      %v145 = vsub.s32 %v144, 2
      %vm146 = vcmp.gt.s32.totalorder 0, %v145
      %v147 = vsel %vm146, 0, %v145
      %v148 = vsub.s32 32, %v147
      %v149 = vshll.u32 %v140, %v147
      %v150 = vshrl.u32 %v132, %v148
      %v151 = vor.u32 %v149, %v150
      %v152 = vsub.s32 4294967266, %v147
      %v153 = vadd.s32 %v152, 127
      %v154 = vshll.u32 %v153, 23
      %v155 = vor.u32 4788187, %v154
      %v156 = vand.u32 2147483647, %v155
      %v158 = vcvt.s32.f32 %v151
      %v159 = vmul.f32 %v158, %v156
      %v160 = vxor.u32 %v159, 2147483648
      %v161 = vsel %vm40, %v160, %v159
      %v162 = vsub.s32 4, %v138
      %v163 = vsel %vm40, %v162, %v138
      %v164 = vsel %vm39, %v33, %v161
      %v165 = vsel %vm39, 0, %v163
      %v166 = vmul.f32 %v164, %v164
      %v167 = vmul.f32 %v166, -0.001358992
      %v168 = vadd.f32 %v167, 0.041655596
      %v169 = vmul.f32 %v166, %v168
      %v170 = vadd.f32 %v169, -0.4999988
      %v171 = vmul.f32 %v166, %v170
      %v172 = vadd.f32 1.0, %v171
      %v173 = vmul.f32 %v164, %v164
      %v174 = vmul.f32 %v173, -0.00019511016
      %v175 = vadd.f32 %v174, 0.008332121
      %v176 = vmul.f32 %v173, %v175
      %v177 = vadd.f32 %v176, -0.16666654
      %v178 = vmul.f32 %v173, %v177
      %v179 = vadd.f32 %v178, 1.0
      %v180 = vmul.f32 %v179, %v164
      %vm181 = vweird.f32 %v33
      %v182 = vadd.s32 %v165, 3
      %v183 = vand.u32 %v182, 3
      %vm184 = vcmp.lt.s32.totalorder %v183, 2
      %vm185 = vcmp.eq.s32.totalorder %v183, 0
      %v186 = vxor.u32 %v180, 2147483648
      %v187 = vsel %vm185, %v172, %v186
      %vm188 = vcmp.eq.s32.totalorder %v183, 2
      %v189 = vxor.u32 %v172, 2147483648
      %v190 = vsel %vm188, %v189, %v180
      %v191 = vsel %vm184, %v187, %v190
      %v192 = vsel %vm181, nan, %v191
      %v193 = vand.u32 2147483647, %v34
      %vm194 = vcmp.le.f32.partialorder %v193, 0.7853982
      %vm195 = vcmp.lt.s32.totalorder %v34, 0
      %v196 = vand.u32 %v34, 2139095040
      %v197 = vshrl.u32 %v196, 23
      %v198 = vsub.s32 %v197, 127
      %v199 = vand.u32 2147483647, %v34
      %v200 = vand.u32 %v199, 8388607
      %v201 = vor.u32 %v200, 8388608
      %v202 = vsub.s32 0, %v201
      %v203 = vadd.s32 %v198, 1
      %vm204 = vcmp.gt.s32.totalorder %v203, 0
      %v205 = vsel %vm204, %v203, 0
      %v206 = vshrl.u32 %v205, 5
      %v207 = vand.u32 %v205, 31
      %v208 = vsub.s32 32, %v207
      %v209 = vshrl.u32 683565275, %v208
      %v210 = vshll.u32 683565275, %v207
      %v211 = vshrl.u32 2475754826, %v208
      %v212 = vor.u32 %v210, %v211
      %v213 = vshll.u32 2475754826, %v207
      %v214 = vshrl.u32 2131351028, %v208
      %v215 = vor.u32 %v213, %v214
      %v216 = vshll.u32 2131351028, %v207
      %v217 = vshrl.u32 2102212464, %v208
      %v218 = vor.u32 %v216, %v217
      %v219 = vshll.u32 2102212464, %v207
      %v220 = vshrl.u32 920167782, %v208
      %v221 = vor.u32 %v219, %v220
      %v222 = vshll.u32 920167782, %v207
      %v223 = vshrl.u32 1326507024, %v208
      %v224 = vor.u32 %v222, %v223
      %vm225 = vcmp.lt.s32.totalorder %v206, 1
      %vm226 = vcmp.lt.s32.totalorder %v206, 2
      %vm227 = vcmp.lt.s32.totalorder %v206, 3
      %vm228 = vcmp.lt.s32.totalorder %v206, 4
      %v229 = vsel %vm225, %v209, %v212
      %v230 = vsel %vm228, %v218, 2102212464
      %v231 = vsel %vm227, %v215, %v230
      %v232 = vsel %vm226, %v229, %v231
      %v233 = vsel %vm225, %v212, %v215
      %v234 = vsel %vm228, %v221, 920167782
      %v235 = vsel %vm227, %v218, %v234
      %v236 = vsel %vm226, %v233, %v235
      %v237 = vsel %vm225, %v215, %v218
      %v238 = vsel %vm228, %v224, 1326507024
      %v239 = vsel %vm227, %v221, %v238
      %v240 = vsel %vm226, %v237, %v239
      %v241 = vshll.u32 %v201, 8
      %v242 = vand.u32 %v241, 65535
      %v243 = vshrl.u32 %v241, 16
      %v244 = vand.u32 %v240, 65535
      %v245 = vshrl.u32 %v240, 16
      %v246 = vmul.u32 %v242, %v244
      %v247 = vmul.u32 %v242, %v245
      %v248 = vmul.u32 %v243, %v244
      %v249 = vmul.u32 %v243, %v245
      %v250 = vshll.u32 %v247, 16
      %v251 = vshrl.u32 %v247, 16
      %v252 = vshll.u32 %v248, 16
      %v253 = vshrl.u32 %v248, 16
      %vm254 = vc.u32 %v246, %v250
      %v255 = vsel %vm254, 1, 0
      %v256 = vadd.s32 %v246, %v250
      %v257 = vadd.s32 %v249, %v255
      %vm258 = vc.u32 %v256, %v252
      %v259 = vsel %vm258, 1, 0
      %v260 = vadd.s32 %v256, %v252
      %v261 = vadd.s32 %v257, %v259
      %v262 = vadd.s32 %v261, %v251
      %v263 = vadd.s32 %v262, %v253
      %v264 = vand.u32 %v241, 65535
      %v265 = vshrl.u32 %v241, 16
      %v266 = vand.u32 %v236, 65535
      %v267 = vshrl.u32 %v236, 16
      %v268 = vmul.u32 %v264, %v266
      %v269 = vmul.u32 %v264, %v267
      %v270 = vmul.u32 %v265, %v266
      %v271 = vmul.u32 %v265, %v267
      %v272 = vshll.u32 %v269, 16
      %v273 = vshrl.u32 %v269, 16
      %v274 = vshll.u32 %v270, 16
      %v275 = vshrl.u32 %v270, 16
      %vm276 = vc.u32 %v268, %v272
      %v277 = vsel %vm276, 1, 0
      %v278 = vadd.s32 %v268, %v272
      %v279 = vadd.s32 %v271, %v277
      %vm280 = vc.u32 %v278, %v274
      %v281 = vsel %vm280, 1, 0
      %v282 = vadd.s32 %v278, %v274
      %v283 = vadd.s32 %v279, %v281
      %v284 = vadd.s32 %v283, %v273
      %v285 = vadd.s32 %v284, %v275
      %v286 = vmul.u32 %v241, %v232
      %v287 = vadd.s32 %v263, %v282
      %vm288 = vc.u32 %v263, %v282
      %v289 = vadd.s32 %v285, 1
      %v290 = vsel %vm288, %v289, %v285
      %v291 = vadd.s32 %v286, %v290
      %v292 = vadd.s32 %v291, 536870912
      %v293 = vshrl.u32 %v292, 30
      %v294 = vshll.u32 %v293, 30
      %v295 = vsub.s32 %v291, %v294
      %vm296 = vcmp.lt.s32.totalorder %v295, 0
      %v297 = vsub.s32 0, %v295
      %v298 = vsel %vm296, %v297, %v295
      %v299 = vclz %v298
      %v300 = vsub.s32 %v299, 2
      %vm301 = vcmp.gt.s32.totalorder 0, %v300
      %v302 = vsel %vm301, 0, %v300
      %v303 = vsub.s32 32, %v302
      %v304 = vshll.u32 %v295, %v302
      %v305 = vshrl.u32 %v287, %v303
      %v306 = vor.u32 %v304, %v305
      %v307 = vsub.s32 4294967266, %v302
      %v308 = vadd.s32 %v307, 127
      %v309 = vshll.u32 %v308, 23
      %v310 = vor.u32 4788187, %v309
      %v311 = vand.u32 2147483647, %v310
      %v313 = vcvt.s32.f32 %v306
      %v314 = vmul.f32 %v313, %v311
      %v315 = vxor.u32 %v314, 2147483648
      %v316 = vsel %vm195, %v315, %v314
      %v317 = vsub.s32 4, %v293
      %v318 = vsel %vm195, %v317, %v293
      %v319 = vsel %vm194, %v34, %v316
      %v320 = vsel %vm194, 0, %v318
      %v321 = vmul.f32 %v319, %v319
      %v322 = vmul.f32 %v321, -0.001358992
      %v323 = vadd.f32 %v322, 0.041655596
      %v324 = vmul.f32 %v321, %v323
      %v325 = vadd.f32 %v324, -0.4999988
      %v326 = vmul.f32 %v321, %v325
      %v327 = vadd.f32 1.0, %v326
      %v328 = vmul.f32 %v319, %v319
      %v329 = vmul.f32 %v328, -0.00019511016
      %v330 = vadd.f32 %v329, 0.008332121
      %v331 = vmul.f32 %v328, %v330
      %v332 = vadd.f32 %v331, -0.16666654
      %v333 = vmul.f32 %v328, %v332
      %v334 = vadd.f32 %v333, 1.0
      %v335 = vmul.f32 %v334, %v319
      %vm336 = vweird.f32 %v34
      %v337 = vadd.s32 %v320, 3
      %v338 = vand.u32 %v337, 3
      %vm339 = vcmp.lt.s32.totalorder %v338, 2
      %vm340 = vcmp.eq.s32.totalorder %v338, 0
      %v341 = vxor.u32 %v335, 2147483648
      %v342 = vsel %vm340, %v327, %v341
      %vm343 = vcmp.eq.s32.totalorder %v338, 2
      %v344 = vxor.u32 %v327, 2147483648
      %v345 = vsel %vm343, %v344, %v335
      %v346 = vsel %vm339, %v342, %v345
      %v347 = vsel %vm336, nan, %v346
      %v348 = vand.u32 2147483647, %v33
      %vm349 = vcmp.le.f32.partialorder %v348, 0.7853982
      %vm350 = vcmp.lt.s32.totalorder %v33, 0
      %v351 = vand.u32 %v33, 2139095040
      %v352 = vshrl.u32 %v351, 23
      %v353 = vsub.s32 %v352, 127
      %v354 = vand.u32 2147483647, %v33
      %v355 = vand.u32 %v354, 8388607
      %v356 = vor.u32 %v355, 8388608
      %v357 = vsub.s32 0, %v356
      %v358 = vadd.s32 %v353, 1
      %vm359 = vcmp.gt.s32.totalorder %v358, 0
      %v360 = vsel %vm359, %v358, 0
      %v361 = vshrl.u32 %v360, 5
      %v362 = vand.u32 %v360, 31
      %v363 = vsub.s32 32, %v362
      %v364 = vshrl.u32 683565275, %v363
      %v365 = vshll.u32 683565275, %v362
      %v366 = vshrl.u32 2475754826, %v363
      %v367 = vor.u32 %v365, %v366
      %v368 = vshll.u32 2475754826, %v362
      %v369 = vshrl.u32 2131351028, %v363
      %v370 = vor.u32 %v368, %v369
      %v371 = vshll.u32 2131351028, %v362
      %v372 = vshrl.u32 2102212464, %v363
      %v373 = vor.u32 %v371, %v372
      %v374 = vshll.u32 2102212464, %v362
      %v375 = vshrl.u32 920167782, %v363
      %v376 = vor.u32 %v374, %v375
      %v377 = vshll.u32 920167782, %v362
      %v378 = vshrl.u32 1326507024, %v363
      %v379 = vor.u32 %v377, %v378
      %vm380 = vcmp.lt.s32.totalorder %v361, 1
      %vm381 = vcmp.lt.s32.totalorder %v361, 2
      %vm382 = vcmp.lt.s32.totalorder %v361, 3
      %vm383 = vcmp.lt.s32.totalorder %v361, 4
      %v384 = vsel %vm380, %v364, %v367
      %v385 = vsel %vm383, %v373, 2102212464
      %v386 = vsel %vm382, %v370, %v385
      %v387 = vsel %vm381, %v384, %v386
      %v388 = vsel %vm380, %v367, %v370
      %v389 = vsel %vm383, %v376, 920167782
      %v390 = vsel %vm382, %v373, %v389
      %v391 = vsel %vm381, %v388, %v390
      %v392 = vsel %vm380, %v370, %v373
      %v393 = vsel %vm383, %v379, 1326507024
      %v394 = vsel %vm382, %v376, %v393
      %v395 = vsel %vm381, %v392, %v394
      %v396 = vshll.u32 %v356, 8
      %v397 = vand.u32 %v396, 65535
      %v398 = vshrl.u32 %v396, 16
      %v399 = vand.u32 %v395, 65535
      %v400 = vshrl.u32 %v395, 16
      %v401 = vmul.u32 %v397, %v399
      %v402 = vmul.u32 %v397, %v400
      %v403 = vmul.u32 %v398, %v399
      %v404 = vmul.u32 %v398, %v400
      %v405 = vshll.u32 %v402, 16
      %v406 = vshrl.u32 %v402, 16
      %v407 = vshll.u32 %v403, 16
      %v408 = vshrl.u32 %v403, 16
      %vm409 = vc.u32 %v401, %v405
      %v410 = vsel %vm409, 1, 0
      %v411 = vadd.s32 %v401, %v405
      %v412 = vadd.s32 %v404, %v410
      %vm413 = vc.u32 %v411, %v407
      %v414 = vsel %vm413, 1, 0
      %v415 = vadd.s32 %v411, %v407
      %v416 = vadd.s32 %v412, %v414
      %v417 = vadd.s32 %v416, %v406
      %v418 = vadd.s32 %v417, %v408
      %v419 = vand.u32 %v396, 65535
      %v420 = vshrl.u32 %v396, 16
      %v421 = vand.u32 %v391, 65535
      %v422 = vshrl.u32 %v391, 16
      %v423 = vmul.u32 %v419, %v421
      %v424 = vmul.u32 %v419, %v422
      %v425 = vmul.u32 %v420, %v421
      %v426 = vmul.u32 %v420, %v422
      %v427 = vshll.u32 %v424, 16
      %v428 = vshrl.u32 %v424, 16
      %v429 = vshll.u32 %v425, 16
      %v430 = vshrl.u32 %v425, 16
      %vm431 = vc.u32 %v423, %v427
      %v432 = vsel %vm431, 1, 0
      %v433 = vadd.s32 %v423, %v427
      %v434 = vadd.s32 %v426, %v432
      %vm435 = vc.u32 %v433, %v429
      %v436 = vsel %vm435, 1, 0
      %v437 = vadd.s32 %v433, %v429
      %v438 = vadd.s32 %v434, %v436
      %v439 = vadd.s32 %v438, %v428
      %v440 = vadd.s32 %v439, %v430
      %v441 = vmul.u32 %v396, %v387
      %v442 = vadd.s32 %v418, %v437
      %vm443 = vc.u32 %v418, %v437
      %v444 = vadd.s32 %v440, 1
      %v445 = vsel %vm443, %v444, %v440
      %v446 = vadd.s32 %v441, %v445
      %v447 = vadd.s32 %v446, 536870912
      %v448 = vshrl.u32 %v447, 30
      %v449 = vshll.u32 %v448, 30
      %v450 = vsub.s32 %v446, %v449
      %vm451 = vcmp.lt.s32.totalorder %v450, 0
      %v452 = vsub.s32 0, %v450
      %v453 = vsel %vm451, %v452, %v450
      %v454 = vclz %v453
      %v455 = vsub.s32 %v454, 2
      %vm456 = vcmp.gt.s32.totalorder 0, %v455
      %v457 = vsel %vm456, 0, %v455
      %v458 = vsub.s32 32, %v457
      %v459 = vshll.u32 %v450, %v457
      %v460 = vshrl.u32 %v442, %v458
      %v461 = vor.u32 %v459, %v460
      %v462 = vsub.s32 4294967266, %v457
      %v463 = vadd.s32 %v462, 127
      %v464 = vshll.u32 %v463, 23
      %v465 = vor.u32 4788187, %v464
      %v466 = vand.u32 2147483647, %v465
      %v468 = vcvt.s32.f32 %v461
      %v469 = vmul.f32 %v468, %v466
      %v470 = vxor.u32 %v469, 2147483648
      %v471 = vsel %vm350, %v470, %v469
      %v472 = vsub.s32 4, %v448
      %v473 = vsel %vm350, %v472, %v448
      %v474 = vsel %vm349, %v33, %v471
      %v475 = vsel %vm349, 0, %v473
      %v476 = vmul.f32 %v474, %v474
      %v477 = vmul.f32 %v476, -0.001358992
      %v478 = vadd.f32 %v477, 0.041655596
      %v479 = vmul.f32 %v476, %v478
      %v480 = vadd.f32 %v479, -0.4999988
      %v481 = vmul.f32 %v476, %v480
      %v482 = vadd.f32 1.0, %v481
      %v483 = vmul.f32 %v474, %v474
      %v484 = vmul.f32 %v483, -0.00019511016
      %v485 = vadd.f32 %v484, 0.008332121
      %v486 = vmul.f32 %v483, %v485
      %v487 = vadd.f32 %v486, -0.16666654
      %v488 = vmul.f32 %v483, %v487
      %v489 = vadd.f32 %v488, 1.0
      %v490 = vmul.f32 %v489, %v474
      %vm491 = vweird.f32 %v33
      %v492 = vand.u32 %v475, 3
      %vm493 = vcmp.lt.s32.totalorder %v492, 2
      %vm494 = vcmp.eq.s32.totalorder %v492, 0
      %v495 = vxor.u32 %v490, 2147483648
      %v496 = vsel %vm494, %v482, %v495
      %vm497 = vcmp.eq.s32.totalorder %v492, 2
      %v498 = vxor.u32 %v482, 2147483648
      %v499 = vsel %vm497, %v498, %v490
      %v500 = vsel %vm493, %v496, %v499
      %v501 = vsel %vm491, nan, %v500
      %v502 = vand.u32 2147483647, %v34
      %vm503 = vcmp.le.f32.partialorder %v502, 0.7853982
      %vm504 = vcmp.lt.s32.totalorder %v34, 0
      %v505 = vand.u32 %v34, 2139095040
      %v506 = vshrl.u32 %v505, 23
      %v507 = vsub.s32 %v506, 127
      %v508 = vand.u32 2147483647, %v34
      %v509 = vand.u32 %v508, 8388607
      %v510 = vor.u32 %v509, 8388608
      %v511 = vsub.s32 0, %v510
      %v512 = vadd.s32 %v507, 1
      %vm513 = vcmp.gt.s32.totalorder %v512, 0
      %v514 = vsel %vm513, %v512, 0
      %v515 = vshrl.u32 %v514, 5
      %v516 = vand.u32 %v514, 31
      %v517 = vsub.s32 32, %v516
      %v518 = vshrl.u32 683565275, %v517
      %v519 = vshll.u32 683565275, %v516
      %v520 = vshrl.u32 2475754826, %v517
      %v521 = vor.u32 %v519, %v520
      %v522 = vshll.u32 2475754826, %v516
      %v523 = vshrl.u32 2131351028, %v517
      %v524 = vor.u32 %v522, %v523
      %v525 = vshll.u32 2131351028, %v516
      %v526 = vshrl.u32 2102212464, %v517
      %v527 = vor.u32 %v525, %v526
      %v528 = vshll.u32 2102212464, %v516
      %v529 = vshrl.u32 920167782, %v517
      %v530 = vor.u32 %v528, %v529
      %v531 = vshll.u32 920167782, %v516
      %v532 = vshrl.u32 1326507024, %v517
      %v533 = vor.u32 %v531, %v532
      %vm534 = vcmp.lt.s32.totalorder %v515, 1
      %vm535 = vcmp.lt.s32.totalorder %v515, 2
      %vm536 = vcmp.lt.s32.totalorder %v515, 3
      %vm537 = vcmp.lt.s32.totalorder %v515, 4
      %v538 = vsel %vm534, %v518, %v521
      %v539 = vsel %vm537, %v527, 2102212464
      %v540 = vsel %vm536, %v524, %v539
      %v541 = vsel %vm535, %v538, %v540
      %v542 = vsel %vm534, %v521, %v524
      %v543 = vsel %vm537, %v530, 920167782
      %v544 = vsel %vm536, %v527, %v543
      %v545 = vsel %vm535, %v542, %v544
      %v546 = vsel %vm534, %v524, %v527
      %v547 = vsel %vm537, %v533, 1326507024
      %v548 = vsel %vm536, %v530, %v547
      %v549 = vsel %vm535, %v546, %v548
      %v550 = vshll.u32 %v510, 8
      %v551 = vand.u32 %v550, 65535
      %v552 = vshrl.u32 %v550, 16
      %v553 = vand.u32 %v549, 65535
      %v554 = vshrl.u32 %v549, 16
      %v555 = vmul.u32 %v551, %v553
      %v556 = vmul.u32 %v551, %v554
      %v557 = vmul.u32 %v552, %v553
      %v558 = vmul.u32 %v552, %v554
      %v559 = vshll.u32 %v556, 16
      %v560 = vshrl.u32 %v556, 16
      %v561 = vshll.u32 %v557, 16
      %v562 = vshrl.u32 %v557, 16
      %vm563 = vc.u32 %v555, %v559
      %v564 = vsel %vm563, 1, 0
      %v565 = vadd.s32 %v555, %v559
      %v566 = vadd.s32 %v558, %v564
      %vm567 = vc.u32 %v565, %v561
      %v568 = vsel %vm567, 1, 0
      %v569 = vadd.s32 %v565, %v561
      %v570 = vadd.s32 %v566, %v568
      %v571 = vadd.s32 %v570, %v560
      %v572 = vadd.s32 %v571, %v562
      %v573 = vand.u32 %v550, 65535
      %v574 = vshrl.u32 %v550, 16
      %v575 = vand.u32 %v545, 65535
      %v576 = vshrl.u32 %v545, 16
      %v577 = vmul.u32 %v573, %v575
      %v578 = vmul.u32 %v573, %v576
      %v579 = vmul.u32 %v574, %v575
      %v580 = vmul.u32 %v574, %v576
      %v581 = vshll.u32 %v578, 16
      %v582 = vshrl.u32 %v578, 16
      %v583 = vshll.u32 %v579, 16
      %v584 = vshrl.u32 %v579, 16
      %vm585 = vc.u32 %v577, %v581
      %v586 = vsel %vm585, 1, 0
      %v587 = vadd.s32 %v577, %v581
      %v588 = vadd.s32 %v580, %v586
      %vm589 = vc.u32 %v587, %v583
      %v590 = vsel %vm589, 1, 0
      %v591 = vadd.s32 %v587, %v583
      %v592 = vadd.s32 %v588, %v590
      %v593 = vadd.s32 %v592, %v582
      %v594 = vadd.s32 %v593, %v584
      %v595 = vmul.u32 %v550, %v541
      %v596 = vadd.s32 %v572, %v591
      %vm597 = vc.u32 %v572, %v591
      %v598 = vadd.s32 %v594, 1
      %v599 = vsel %vm597, %v598, %v594
      %v600 = vadd.s32 %v595, %v599
      %v601 = vadd.s32 %v600, 536870912
      %v602 = vshrl.u32 %v601, 30
      %v603 = vshll.u32 %v602, 30
      %v604 = vsub.s32 %v600, %v603
      %vm605 = vcmp.lt.s32.totalorder %v604, 0
      %v606 = vsub.s32 0, %v604
      %v607 = vsel %vm605, %v606, %v604
      %v608 = vclz %v607
      %v609 = vsub.s32 %v608, 2
      %vm610 = vcmp.gt.s32.totalorder 0, %v609
      %v611 = vsel %vm610, 0, %v609
      %v612 = vsub.s32 32, %v611
      %v613 = vshll.u32 %v604, %v611
      %v614 = vshrl.u32 %v596, %v612
      %v615 = vor.u32 %v613, %v614
      %v616 = vsub.s32 4294967266, %v611
      %v617 = vadd.s32 %v616, 127
      %v618 = vshll.u32 %v617, 23
      %v619 = vor.u32 4788187, %v618
      %v620 = vand.u32 2147483647, %v619
      %v622 = vcvt.s32.f32 %v615
      %v623 = vmul.f32 %v622, %v620
      %v624 = vxor.u32 %v623, 2147483648
      %v625 = vsel %vm504, %v624, %v623
      %v626 = vsub.s32 4, %v602
      %v627 = vsel %vm504, %v626, %v602
      %v628 = vsel %vm503, %v34, %v625
      %v629 = vsel %vm503, 0, %v627
      %v630 = vmul.f32 %v628, %v628
      %v631 = vmul.f32 %v630, -0.001358992
      %v632 = vadd.f32 %v631, 0.041655596
      %v633 = vmul.f32 %v630, %v632
      %v634 = vadd.f32 %v633, -0.4999988
      %v635 = vmul.f32 %v630, %v634
      %v636 = vadd.f32 1.0, %v635
      %v637 = vmul.f32 %v628, %v628
      %v638 = vmul.f32 %v637, -0.00019511016
      %v639 = vadd.f32 %v638, 0.008332121
      %v640 = vmul.f32 %v637, %v639
      %v641 = vadd.f32 %v640, -0.16666654
      %v642 = vmul.f32 %v637, %v641
      %v643 = vadd.f32 %v642, 1.0
      %v644 = vmul.f32 %v643, %v628
      %vm645 = vweird.f32 %v34
      %v646 = vand.u32 %v629, 3
      %vm647 = vcmp.lt.s32.totalorder %v646, 2
      %vm648 = vcmp.eq.s32.totalorder %v646, 0
      %v649 = vxor.u32 %v644, 2147483648
      %v650 = vsel %vm648, %v636, %v649
      %vm651 = vcmp.eq.s32.totalorder %v646, 2
      %v652 = vxor.u32 %v636, 2147483648
      %v653 = vsel %vm651, %v652, %v644
      %v654 = vsel %vm647, %v650, %v653
      %v655 = vsel %vm645, nan, %v654
      %s656 = sadd.s32 %s31, 48
      %s657 = scalar_lea.vmem [#allocation5], %s656
      %658 = vst [vmem:[%s657] sm:$0xff] %v192
      %659 = vst [vmem:[%s657 + $0x8] sm:$0xff] %v347
      %s660 = sadd.s32 %s31, 96
      %s661 = scalar_lea.vmem [#allocation5], %s660
      %662 = vst [vmem:[%s661] sm:$0xff] %v501
      %663 = vst [vmem:[%s661 + $0x8] sm:$0xff] %v655
      %v664 = vmul.f32 %v192, 2.0
      %v665 = vmul.f32 %v347, 2.0
      %v666 = vmul.f32 %v664, %v501
      %v667 = vmul.f32 %v665, %v655
      %v668 = vmul.f32 %v501, %v501
      %v669 = vmul.f32 %v655, %v655
      %v670 = vmul.f32 %v192, %v192
      %v671 = vmul.f32 %v347, %v347
      %v672 = vsub.f32 %v668, %v670
      %v673 = vsub.f32 %v669, %v671
      %s674 = sadd.s32 %s31, 144
      %s675 = scalar_lea.vmem [#allocation5], %s674
      %676 = vst [vmem:[%s675] sm:$0xff] %v666
      %677 = vst [vmem:[%s675 + $0x8] sm:$0xff] %v667
      %s678 = sadd.s32 %s31, 192
      %s679 = scalar_lea.vmem [#allocation5], %s678
      %680 = vst [vmem:[%s679] sm:$0xff] %v672
      %681 = vst [vmem:[%s679 + $0x8] sm:$0xff] %v673
      %v682 = vmul.f32 %v666, 2.0
      %v683 = vmul.f32 %v667, 2.0
      %v684 = vmul.f32 %v682, %v672
      %v685 = vmul.f32 %v683, %v673
      %v686 = vmul.f32 %v672, %v672
      %v687 = vmul.f32 %v673, %v673
      %v688 = vmul.f32 %v666, %v666
      %v689 = vmul.f32 %v667, %v667
      %v690 = vsub.f32 %v686, %v688
      %v691 = vsub.f32 %v687, %v689
      %s692 = sadd.s32 %s31, 240
      %s693 = scalar_lea.vmem [#allocation5], %s692
      %694 = vst [vmem:[%s693] sm:$0xff] %v684
      %695 = vst [vmem:[%s693 + $0x8] sm:$0xff] %v685
      %s696 = sadd.s32 %s31, 288
      %s697 = scalar_lea.vmem [#allocation5], %s696
      %698 = vst [vmem:[%s697] sm:$0xff] %v690
      %699 = vst [vmem:[%s697 + $0x8] sm:$0xff] %v691
      %v700 = vmul.f32 %v684, 2.0
      %v701 = vmul.f32 %v685, 2.0
      %v702 = vmul.f32 %v700, %v690
      %v703 = vmul.f32 %v701, %v691
      %v704 = vmul.f32 %v690, %v690
      %v705 = vmul.f32 %v691, %v691
      %v706 = vmul.f32 %v684, %v684
      %v707 = vmul.f32 %v685, %v685
      %v708 = vsub.f32 %v704, %v706
      %v709 = vsub.f32 %v705, %v707
      %s710 = sadd.s32 %s31, 336
      %s711 = scalar_lea.vmem [#allocation5], %s710
      %712 = vst [vmem:[%s711] sm:$0xff] %v702
      %713 = vst [vmem:[%s711 + $0x8] sm:$0xff] %v703
      %s714 = sadd.s32 %s31, 384
      %s715 = scalar_lea.vmem [#allocation5], %s714
      %716 = vst [vmem:[%s715] sm:$0xff] %v708
      %717 = vst [vmem:[%s715 + $0x8] sm:$0xff] %v709
      %v718 = vmul.f32 %v702, 2.0
      %v719 = vmul.f32 %v703, 2.0
      %v720 = vmul.f32 %v718, %v708
      %v721 = vmul.f32 %v719, %v709
      %v722 = vmul.f32 %v708, %v708
      %v723 = vmul.f32 %v709, %v709
      %v724 = vmul.f32 %v702, %v702
      %v725 = vmul.f32 %v703, %v703
      %v726 = vsub.f32 %v722, %v724
      %v727 = vsub.f32 %v723, %v725
      %s728 = sadd.s32 %s31, 432
      %s729 = scalar_lea.vmem [#allocation5], %s728
      %730 = vst [vmem:[%s729] sm:$0xff] %v720
      %731 = vst [vmem:[%s729 + $0x8] sm:$0xff] %v721
      %s732 = sadd.s32 %s31, 480
      %s733 = scalar_lea.vmem [#allocation5], %s732
      %734 = vst [vmem:[%s733] sm:$0xff] %v726
      %735 = vst [vmem:[%s733 + $0x8] sm:$0xff] %v727
      %v736 = vmul.f32 %v33, 32.0
      %v737 = vmul.f32 %v34, 32.0
      %v738 = vand.u32 2147483647, %v736
      %vm739 = vcmp.le.f32.partialorder %v738, 0.7853982
      %vm740 = vcmp.lt.s32.totalorder %v736, 0
      %v741 = vand.u32 %v736, 2139095040
      %v742 = vshrl.u32 %v741, 23
      %v743 = vsub.s32 %v742, 127
      %v744 = vand.u32 2147483647, %v736
      %v745 = vand.u32 %v744, 8388607
      %v746 = vor.u32 %v745, 8388608
      %v747 = vsub.s32 0, %v746
      %v748 = vadd.s32 %v743, 1
      %vm749 = vcmp.gt.s32.totalorder %v748, 0
      %v750 = vsel %vm749, %v748, 0
      %v751 = vshrl.u32 %v750, 5
      %v752 = vand.u32 %v750, 31
      %v753 = vsub.s32 32, %v752
      %v754 = vshrl.u32 683565275, %v753
      %v755 = vshll.u32 683565275, %v752
      %v756 = vshrl.u32 2475754826, %v753
      %v757 = vor.u32 %v755, %v756
      %v758 = vshll.u32 2475754826, %v752
      %v759 = vshrl.u32 2131351028, %v753
      %v760 = vor.u32 %v758, %v759
      %v761 = vshll.u32 2131351028, %v752
      %v762 = vshrl.u32 2102212464, %v753
      %v763 = vor.u32 %v761, %v762
      %v764 = vshll.u32 2102212464, %v752
      %v765 = vshrl.u32 920167782, %v753
      %v766 = vor.u32 %v764, %v765
      %v767 = vshll.u32 920167782, %v752
      %v768 = vshrl.u32 1326507024, %v753
      %v769 = vor.u32 %v767, %v768
      %vm770 = vcmp.lt.s32.totalorder %v751, 1
      %vm771 = vcmp.lt.s32.totalorder %v751, 2
      %vm772 = vcmp.lt.s32.totalorder %v751, 3
      %vm773 = vcmp.lt.s32.totalorder %v751, 4
      %v774 = vsel %vm770, %v754, %v757
      %v775 = vsel %vm773, %v763, 2102212464
      %v776 = vsel %vm772, %v760, %v775
      %v777 = vsel %vm771, %v774, %v776
      %v778 = vsel %vm770, %v757, %v760
      %v779 = vsel %vm773, %v766, 920167782
      %v780 = vsel %vm772, %v763, %v779
      %v781 = vsel %vm771, %v778, %v780
      %v782 = vsel %vm770, %v760, %v763
      %v783 = vsel %vm773, %v769, 1326507024
      %v784 = vsel %vm772, %v766, %v783
      %v785 = vsel %vm771, %v782, %v784
      %v786 = vshll.u32 %v746, 8
      %v787 = vand.u32 %v786, 65535
      %v788 = vshrl.u32 %v786, 16
      %v789 = vand.u32 %v785, 65535
      %v790 = vshrl.u32 %v785, 16
      %v791 = vmul.u32 %v787, %v789
      %v792 = vmul.u32 %v787, %v790
      %v793 = vmul.u32 %v788, %v789
      %v794 = vmul.u32 %v788, %v790
      %v795 = vshll.u32 %v792, 16
      %v796 = vshrl.u32 %v792, 16
      %v797 = vshll.u32 %v793, 16
      %v798 = vshrl.u32 %v793, 16
      %vm799 = vc.u32 %v791, %v795
      %v800 = vsel %vm799, 1, 0
      %v801 = vadd.s32 %v791, %v795
      %v802 = vadd.s32 %v794, %v800
      %vm803 = vc.u32 %v801, %v797
      %v804 = vsel %vm803, 1, 0
      %v805 = vadd.s32 %v801, %v797
      %v806 = vadd.s32 %v802, %v804
      %v807 = vadd.s32 %v806, %v796
      %v808 = vadd.s32 %v807, %v798
      %v809 = vand.u32 %v786, 65535
      %v810 = vshrl.u32 %v786, 16
      %v811 = vand.u32 %v781, 65535
      %v812 = vshrl.u32 %v781, 16
      %v813 = vmul.u32 %v809, %v811
      %v814 = vmul.u32 %v809, %v812
      %v815 = vmul.u32 %v810, %v811
      %v816 = vmul.u32 %v810, %v812
      %v817 = vshll.u32 %v814, 16
      %v818 = vshrl.u32 %v814, 16
      %v819 = vshll.u32 %v815, 16
      %v820 = vshrl.u32 %v815, 16
      %vm821 = vc.u32 %v813, %v817
      %v822 = vsel %vm821, 1, 0
      %v823 = vadd.s32 %v813, %v817
      %v824 = vadd.s32 %v816, %v822
      %vm825 = vc.u32 %v823, %v819
      %v826 = vsel %vm825, 1, 0
      %v827 = vadd.s32 %v823, %v819
      %v828 = vadd.s32 %v824, %v826
      %v829 = vadd.s32 %v828, %v818
      %v830 = vadd.s32 %v829, %v820
      %v831 = vmul.u32 %v786, %v777
      %v832 = vadd.s32 %v808, %v827
      %vm833 = vc.u32 %v808, %v827
      %v834 = vadd.s32 %v830, 1
      %v835 = vsel %vm833, %v834, %v830
      %v836 = vadd.s32 %v831, %v835
      %v837 = vadd.s32 %v836, 536870912
      %v838 = vshrl.u32 %v837, 30
      %v839 = vshll.u32 %v838, 30
      %v840 = vsub.s32 %v836, %v839
      %vm841 = vcmp.lt.s32.totalorder %v840, 0
      %v842 = vsub.s32 0, %v840
      %v843 = vsel %vm841, %v842, %v840
      %v844 = vclz %v843
      %v845 = vsub.s32 %v844, 2
      %vm846 = vcmp.gt.s32.totalorder 0, %v845
      %v847 = vsel %vm846, 0, %v845
      %v848 = vsub.s32 32, %v847
      %v849 = vshll.u32 %v840, %v847
      %v850 = vshrl.u32 %v832, %v848
      %v851 = vor.u32 %v849, %v850
      %v852 = vsub.s32 4294967266, %v847
      %v853 = vadd.s32 %v852, 127
      %v854 = vshll.u32 %v853, 23
      %v855 = vor.u32 4788187, %v854
      %v856 = vand.u32 2147483647, %v855
      %v858 = vcvt.s32.f32 %v851
      %v859 = vmul.f32 %v858, %v856
      %v860 = vxor.u32 %v859, 2147483648
      %v861 = vsel %vm740, %v860, %v859
      %v862 = vsub.s32 4, %v838
      %v863 = vsel %vm740, %v862, %v838
      %v864 = vsel %vm739, %v736, %v861
      %v865 = vsel %vm739, 0, %v863
      %v866 = vmul.f32 %v864, %v864
      %v867 = vmul.f32 %v866, -0.001358992
      %v868 = vadd.f32 %v867, 0.041655596
      %v869 = vmul.f32 %v866, %v868
      %v870 = vadd.f32 %v869, -0.4999988
      %v871 = vmul.f32 %v866, %v870
      %v872 = vadd.f32 1.0, %v871
      %v873 = vmul.f32 %v864, %v864
      %v874 = vmul.f32 %v873, -0.00019511016
      %v875 = vadd.f32 %v874, 0.008332121
      %v876 = vmul.f32 %v873, %v875
      %v877 = vadd.f32 %v876, -0.16666654
      %v878 = vmul.f32 %v873, %v877
      %v879 = vadd.f32 %v878, 1.0
      %v880 = vmul.f32 %v879, %v864
      %vm881 = vweird.f32 %v736
      %v882 = vadd.s32 %v865, 3
      %v883 = vand.u32 %v882, 3
      %vm884 = vcmp.lt.s32.totalorder %v883, 2
      %vm885 = vcmp.eq.s32.totalorder %v883, 0
      %v886 = vxor.u32 %v880, 2147483648
      %v887 = vsel %vm885, %v872, %v886
      %vm888 = vcmp.eq.s32.totalorder %v883, 2
      %v889 = vxor.u32 %v872, 2147483648
      %v890 = vsel %vm888, %v889, %v880
      %v891 = vsel %vm884, %v887, %v890
      %v892 = vsel %vm881, nan, %v891
      %v893 = vand.u32 2147483647, %v737
      %vm894 = vcmp.le.f32.partialorder %v893, 0.7853982
      %vm895 = vcmp.lt.s32.totalorder %v737, 0
      %v896 = vand.u32 %v737, 2139095040
      %v897 = vshrl.u32 %v896, 23
      %v898 = vsub.s32 %v897, 127
      %v899 = vand.u32 2147483647, %v737
      %v900 = vand.u32 %v899, 8388607
      %v901 = vor.u32 %v900, 8388608
      %v902 = vsub.s32 0, %v901
      %v903 = vadd.s32 %v898, 1
      %vm904 = vcmp.gt.s32.totalorder %v903, 0
      %v905 = vsel %vm904, %v903, 0
      %v906 = vshrl.u32 %v905, 5
      %v907 = vand.u32 %v905, 31
      %v908 = vsub.s32 32, %v907
      %v909 = vshrl.u32 683565275, %v908
      %v910 = vshll.u32 683565275, %v907
      %v911 = vshrl.u32 2475754826, %v908
      %v912 = vor.u32 %v910, %v911
      %v913 = vshll.u32 2475754826, %v907
      %v914 = vshrl.u32 2131351028, %v908
      %v915 = vor.u32 %v913, %v914
      %v916 = vshll.u32 2131351028, %v907
      %v917 = vshrl.u32 2102212464, %v908
      %v918 = vor.u32 %v916, %v917
      %v919 = vshll.u32 2102212464, %v907
      %v920 = vshrl.u32 920167782, %v908
      %v921 = vor.u32 %v919, %v920
      %v922 = vshll.u32 920167782, %v907
      %v923 = vshrl.u32 1326507024, %v908
      %v924 = vor.u32 %v922, %v923
      %vm925 = vcmp.lt.s32.totalorder %v906, 1
      %vm926 = vcmp.lt.s32.totalorder %v906, 2
      %vm927 = vcmp.lt.s32.totalorder %v906, 3
      %vm928 = vcmp.lt.s32.totalorder %v906, 4
      %v929 = vsel %vm925, %v909, %v912
      %v930 = vsel %vm928, %v918, 2102212464
      %v931 = vsel %vm927, %v915, %v930
      %v932 = vsel %vm926, %v929, %v931
      %v933 = vsel %vm925, %v912, %v915
      %v934 = vsel %vm928, %v921, 920167782
      %v935 = vsel %vm927, %v918, %v934
      %v936 = vsel %vm926, %v933, %v935
      %v937 = vsel %vm925, %v915, %v918
      %v938 = vsel %vm928, %v924, 1326507024
      %v939 = vsel %vm927, %v921, %v938
      %v940 = vsel %vm926, %v937, %v939
      %v941 = vshll.u32 %v901, 8
      %v942 = vand.u32 %v941, 65535
      %v943 = vshrl.u32 %v941, 16
      %v944 = vand.u32 %v940, 65535
      %v945 = vshrl.u32 %v940, 16
      %v946 = vmul.u32 %v942, %v944
      %v947 = vmul.u32 %v942, %v945
      %v948 = vmul.u32 %v943, %v944
      %v949 = vmul.u32 %v943, %v945
      %v950 = vshll.u32 %v947, 16
      %v951 = vshrl.u32 %v947, 16
      %v952 = vshll.u32 %v948, 16
      %v953 = vshrl.u32 %v948, 16
      %vm954 = vc.u32 %v946, %v950
      %v955 = vsel %vm954, 1, 0
      %v956 = vadd.s32 %v946, %v950
      %v957 = vadd.s32 %v949, %v955
      %vm958 = vc.u32 %v956, %v952
      %v959 = vsel %vm958, 1, 0
      %v960 = vadd.s32 %v956, %v952
      %v961 = vadd.s32 %v957, %v959
      %v962 = vadd.s32 %v961, %v951
      %v963 = vadd.s32 %v962, %v953
      %v964 = vand.u32 %v941, 65535
      %v965 = vshrl.u32 %v941, 16
      %v966 = vand.u32 %v936, 65535
      %v967 = vshrl.u32 %v936, 16
      %v968 = vmul.u32 %v964, %v966
      %v969 = vmul.u32 %v964, %v967
      %v970 = vmul.u32 %v965, %v966
      %v971 = vmul.u32 %v965, %v967
      %v972 = vshll.u32 %v969, 16
      %v973 = vshrl.u32 %v969, 16
      %v974 = vshll.u32 %v970, 16
      %v975 = vshrl.u32 %v970, 16
      %vm976 = vc.u32 %v968, %v972
      %v977 = vsel %vm976, 1, 0
      %v978 = vadd.s32 %v968, %v972
      %v979 = vadd.s32 %v971, %v977
      %vm980 = vc.u32 %v978, %v974
      %v981 = vsel %vm980, 1, 0
      %v982 = vadd.s32 %v978, %v974
      %v983 = vadd.s32 %v979, %v981
      %v984 = vadd.s32 %v983, %v973
      %v985 = vadd.s32 %v984, %v975
      %v986 = vmul.u32 %v941, %v932
      %v987 = vadd.s32 %v963, %v982
      %vm988 = vc.u32 %v963, %v982
      %v989 = vadd.s32 %v985, 1
      %v990 = vsel %vm988, %v989, %v985
      %v991 = vadd.s32 %v986, %v990
      %v992 = vadd.s32 %v991, 536870912
      %v993 = vshrl.u32 %v992, 30
      %v994 = vshll.u32 %v993, 30
      %v995 = vsub.s32 %v991, %v994
      %vm996 = vcmp.lt.s32.totalorder %v995, 0
      %v997 = vsub.s32 0, %v995
      %v998 = vsel %vm996, %v997, %v995
      %v999 = vclz %v998
      %v1000 = vsub.s32 %v999, 2
      %vm1001 = vcmp.gt.s32.totalorder 0, %v1000
      %v1002 = vsel %vm1001, 0, %v1000
      %v1003 = vsub.s32 32, %v1002
      %v1004 = vshll.u32 %v995, %v1002
      %v1005 = vshrl.u32 %v987, %v1003
      %v1006 = vor.u32 %v1004, %v1005
      %v1007 = vsub.s32 4294967266, %v1002
      %v1008 = vadd.s32 %v1007, 127
      %v1009 = vshll.u32 %v1008, 23
      %v1010 = vor.u32 4788187, %v1009
      %v1011 = vand.u32 2147483647, %v1010
      %v1013 = vcvt.s32.f32 %v1006
      %v1014 = vmul.f32 %v1013, %v1011
      %v1015 = vxor.u32 %v1014, 2147483648
      %v1016 = vsel %vm895, %v1015, %v1014
      %v1017 = vsub.s32 4, %v993
      %v1018 = vsel %vm895, %v1017, %v993
      %v1019 = vsel %vm894, %v737, %v1016
      %v1020 = vsel %vm894, 0, %v1018
      %v1021 = vmul.f32 %v1019, %v1019
      %v1022 = vmul.f32 %v1021, -0.001358992
      %v1023 = vadd.f32 %v1022, 0.041655596
      %v1024 = vmul.f32 %v1021, %v1023
      %v1025 = vadd.f32 %v1024, -0.4999988
      %v1026 = vmul.f32 %v1021, %v1025
      %v1027 = vadd.f32 1.0, %v1026
      %v1028 = vmul.f32 %v1019, %v1019
      %v1029 = vmul.f32 %v1028, -0.00019511016
      %v1030 = vadd.f32 %v1029, 0.008332121
      %v1031 = vmul.f32 %v1028, %v1030
      %v1032 = vadd.f32 %v1031, -0.16666654
      %v1033 = vmul.f32 %v1028, %v1032
      %v1034 = vadd.f32 %v1033, 1.0
      %v1035 = vmul.f32 %v1034, %v1019
      %vm1036 = vweird.f32 %v737
      %v1037 = vadd.s32 %v1020, 3
      %v1038 = vand.u32 %v1037, 3
      %vm1039 = vcmp.lt.s32.totalorder %v1038, 2
      %vm1040 = vcmp.eq.s32.totalorder %v1038, 0
      %v1041 = vxor.u32 %v1035, 2147483648
      %v1042 = vsel %vm1040, %v1027, %v1041
      %vm1043 = vcmp.eq.s32.totalorder %v1038, 2
      %v1044 = vxor.u32 %v1027, 2147483648
      %v1045 = vsel %vm1043, %v1044, %v1035
      %v1046 = vsel %vm1039, %v1042, %v1045
      %v1047 = vsel %vm1036, nan, %v1046
      %v1048 = vand.u32 2147483647, %v736
      %vm1049 = vcmp.le.f32.partialorder %v1048, 0.7853982
      %vm1050 = vcmp.lt.s32.totalorder %v736, 0
      %v1051 = vand.u32 %v736, 2139095040
      %v1052 = vshrl.u32 %v1051, 23
      %v1053 = vsub.s32 %v1052, 127
      %v1054 = vand.u32 2147483647, %v736
      %v1055 = vand.u32 %v1054, 8388607
      %v1056 = vor.u32 %v1055, 8388608
      %v1057 = vsub.s32 0, %v1056
      %v1058 = vadd.s32 %v1053, 1
      %vm1059 = vcmp.gt.s32.totalorder %v1058, 0
      %v1060 = vsel %vm1059, %v1058, 0
      %v1061 = vshrl.u32 %v1060, 5
      %v1062 = vand.u32 %v1060, 31
      %v1063 = vsub.s32 32, %v1062
      %v1064 = vshrl.u32 683565275, %v1063
      %v1065 = vshll.u32 683565275, %v1062
      %v1066 = vshrl.u32 2475754826, %v1063
      %v1067 = vor.u32 %v1065, %v1066
      %v1068 = vshll.u32 2475754826, %v1062
      %v1069 = vshrl.u32 2131351028, %v1063
      %v1070 = vor.u32 %v1068, %v1069
      %v1071 = vshll.u32 2131351028, %v1062
      %v1072 = vshrl.u32 2102212464, %v1063
      %v1073 = vor.u32 %v1071, %v1072
      %v1074 = vshll.u32 2102212464, %v1062
      %v1075 = vshrl.u32 920167782, %v1063
      %v1076 = vor.u32 %v1074, %v1075
      %v1077 = vshll.u32 920167782, %v1062
      %v1078 = vshrl.u32 1326507024, %v1063
      %v1079 = vor.u32 %v1077, %v1078
      %vm1080 = vcmp.lt.s32.totalorder %v1061, 1
      %vm1081 = vcmp.lt.s32.totalorder %v1061, 2
      %vm1082 = vcmp.lt.s32.totalorder %v1061, 3
      %vm1083 = vcmp.lt.s32.totalorder %v1061, 4
      %v1084 = vsel %vm1080, %v1064, %v1067
      %v1085 = vsel %vm1083, %v1073, 2102212464
      %v1086 = vsel %vm1082, %v1070, %v1085
      %v1087 = vsel %vm1081, %v1084, %v1086
      %v1088 = vsel %vm1080, %v1067, %v1070
      %v1089 = vsel %vm1083, %v1076, 920167782
      %v1090 = vsel %vm1082, %v1073, %v1089
      %v1091 = vsel %vm1081, %v1088, %v1090
      %v1092 = vsel %vm1080, %v1070, %v1073
      %v1093 = vsel %vm1083, %v1079, 1326507024
      %v1094 = vsel %vm1082, %v1076, %v1093
      %v1095 = vsel %vm1081, %v1092, %v1094
      %v1096 = vshll.u32 %v1056, 8
      %v1097 = vand.u32 %v1096, 65535
      %v1098 = vshrl.u32 %v1096, 16
      %v1099 = vand.u32 %v1095, 65535
      %v1100 = vshrl.u32 %v1095, 16
      %v1101 = vmul.u32 %v1097, %v1099
      %v1102 = vmul.u32 %v1097, %v1100
      %v1103 = vmul.u32 %v1098, %v1099
      %v1104 = vmul.u32 %v1098, %v1100
      %v1105 = vshll.u32 %v1102, 16
      %v1106 = vshrl.u32 %v1102, 16
      %v1107 = vshll.u32 %v1103, 16
      %v1108 = vshrl.u32 %v1103, 16
      %vm1109 = vc.u32 %v1101, %v1105
      %v1110 = vsel %vm1109, 1, 0
      %v1111 = vadd.s32 %v1101, %v1105
      %v1112 = vadd.s32 %v1104, %v1110
      %vm1113 = vc.u32 %v1111, %v1107
      %v1114 = vsel %vm1113, 1, 0
      %v1115 = vadd.s32 %v1111, %v1107
      %v1116 = vadd.s32 %v1112, %v1114
      %v1117 = vadd.s32 %v1116, %v1106
      %v1118 = vadd.s32 %v1117, %v1108
      %v1119 = vand.u32 %v1096, 65535
      %v1120 = vshrl.u32 %v1096, 16
      %v1121 = vand.u32 %v1091, 65535
      %v1122 = vshrl.u32 %v1091, 16
      %v1123 = vmul.u32 %v1119, %v1121
      %v1124 = vmul.u32 %v1119, %v1122
      %v1125 = vmul.u32 %v1120, %v1121
      %v1126 = vmul.u32 %v1120, %v1122
      %v1127 = vshll.u32 %v1124, 16
      %v1128 = vshrl.u32 %v1124, 16
      %v1129 = vshll.u32 %v1125, 16
      %v1130 = vshrl.u32 %v1125, 16
      %vm1131 = vc.u32 %v1123, %v1127
      %v1132 = vsel %vm1131, 1, 0
      %v1133 = vadd.s32 %v1123, %v1127
      %v1134 = vadd.s32 %v1126, %v1132
      %vm1135 = vc.u32 %v1133, %v1129
      %v1136 = vsel %vm1135, 1, 0
      %v1137 = vadd.s32 %v1133, %v1129
      %v1138 = vadd.s32 %v1134, %v1136
      %v1139 = vadd.s32 %v1138, %v1128
      %v1140 = vadd.s32 %v1139, %v1130
      %v1141 = vmul.u32 %v1096, %v1087
      %v1142 = vadd.s32 %v1118, %v1137
      %vm1143 = vc.u32 %v1118, %v1137
      %v1144 = vadd.s32 %v1140, 1
      %v1145 = vsel %vm1143, %v1144, %v1140
      %v1146 = vadd.s32 %v1141, %v1145
      %v1147 = vadd.s32 %v1146, 536870912
      %v1148 = vshrl.u32 %v1147, 30
      %v1149 = vshll.u32 %v1148, 30
      %v1150 = vsub.s32 %v1146, %v1149
      %vm1151 = vcmp.lt.s32.totalorder %v1150, 0
      %v1152 = vsub.s32 0, %v1150
      %v1153 = vsel %vm1151, %v1152, %v1150
      %v1154 = vclz %v1153
      %v1155 = vsub.s32 %v1154, 2
      %vm1156 = vcmp.gt.s32.totalorder 0, %v1155
      %v1157 = vsel %vm1156, 0, %v1155
      %v1158 = vsub.s32 32, %v1157
      %v1159 = vshll.u32 %v1150, %v1157
      %v1160 = vshrl.u32 %v1142, %v1158
      %v1161 = vor.u32 %v1159, %v1160
      %v1162 = vsub.s32 4294967266, %v1157
      %v1163 = vadd.s32 %v1162, 127
      %v1164 = vshll.u32 %v1163, 23
      %v1165 = vor.u32 4788187, %v1164
      %v1166 = vand.u32 2147483647, %v1165
      %v1168 = vcvt.s32.f32 %v1161
      %v1169 = vmul.f32 %v1168, %v1166
      %v1170 = vxor.u32 %v1169, 2147483648
      %v1171 = vsel %vm1050, %v1170, %v1169
      %v1172 = vsub.s32 4, %v1148
      %v1173 = vsel %vm1050, %v1172, %v1148
      %v1174 = vsel %vm1049, %v736, %v1171
      %v1175 = vsel %vm1049, 0, %v1173
      %v1176 = vmul.f32 %v1174, %v1174
      %v1177 = vmul.f32 %v1176, -0.001358992
      %v1178 = vadd.f32 %v1177, 0.041655596
      %v1179 = vmul.f32 %v1176, %v1178
      %v1180 = vadd.f32 %v1179, -0.4999988
      %v1181 = vmul.f32 %v1176, %v1180
      %v1182 = vadd.f32 1.0, %v1181
      %v1183 = vmul.f32 %v1174, %v1174
      %v1184 = vmul.f32 %v1183, -0.00019511016
      %v1185 = vadd.f32 %v1184, 0.008332121
      %v1186 = vmul.f32 %v1183, %v1185
      %v1187 = vadd.f32 %v1186, -0.16666654
      %v1188 = vmul.f32 %v1183, %v1187
      %v1189 = vadd.f32 %v1188, 1.0
      %v1190 = vmul.f32 %v1189, %v1174
      %vm1191 = vweird.f32 %v736
      %v1192 = vand.u32 %v1175, 3
      %vm1193 = vcmp.lt.s32.totalorder %v1192, 2
      %vm1194 = vcmp.eq.s32.totalorder %v1192, 0
      %v1195 = vxor.u32 %v1190, 2147483648
      %v1196 = vsel %vm1194, %v1182, %v1195
      %vm1197 = vcmp.eq.s32.totalorder %v1192, 2
      %v1198 = vxor.u32 %v1182, 2147483648
      %v1199 = vsel %vm1197, %v1198, %v1190
      %v1200 = vsel %vm1193, %v1196, %v1199
      %v1201 = vsel %vm1191, nan, %v1200
      %v1202 = vand.u32 2147483647, %v737
      %vm1203 = vcmp.le.f32.partialorder %v1202, 0.7853982
      %vm1204 = vcmp.lt.s32.totalorder %v737, 0
      %v1205 = vand.u32 %v737, 2139095040
      %v1206 = vshrl.u32 %v1205, 23
      %v1207 = vsub.s32 %v1206, 127
      %v1208 = vand.u32 2147483647, %v737
      %v1209 = vand.u32 %v1208, 8388607
      %v1210 = vor.u32 %v1209, 8388608
      %v1211 = vsub.s32 0, %v1210
      %v1212 = vadd.s32 %v1207, 1
      %vm1213 = vcmp.gt.s32.totalorder %v1212, 0
      %v1214 = vsel %vm1213, %v1212, 0
      %v1215 = vshrl.u32 %v1214, 5
      %v1216 = vand.u32 %v1214, 31
      %v1217 = vsub.s32 32, %v1216
      %v1218 = vshrl.u32 683565275, %v1217
      %v1219 = vshll.u32 683565275, %v1216
      %v1220 = vshrl.u32 2475754826, %v1217
      %v1221 = vor.u32 %v1219, %v1220
      %v1222 = vshll.u32 2475754826, %v1216
      %v1223 = vshrl.u32 2131351028, %v1217
      %v1224 = vor.u32 %v1222, %v1223
      %v1225 = vshll.u32 2131351028, %v1216
      %v1226 = vshrl.u32 2102212464, %v1217
      %v1227 = vor.u32 %v1225, %v1226
      %v1228 = vshll.u32 2102212464, %v1216
      %v1229 = vshrl.u32 920167782, %v1217
      %v1230 = vor.u32 %v1228, %v1229
      %v1231 = vshll.u32 920167782, %v1216
      %v1232 = vshrl.u32 1326507024, %v1217
      %v1233 = vor.u32 %v1231, %v1232
      %vm1234 = vcmp.lt.s32.totalorder %v1215, 1
      %vm1235 = vcmp.lt.s32.totalorder %v1215, 2
      %vm1236 = vcmp.lt.s32.totalorder %v1215, 3
      %vm1237 = vcmp.lt.s32.totalorder %v1215, 4
      %v1238 = vsel %vm1234, %v1218, %v1221
      %v1239 = vsel %vm1237, %v1227, 2102212464
      %v1240 = vsel %vm1236, %v1224, %v1239
      %v1241 = vsel %vm1235, %v1238, %v1240
      %v1242 = vsel %vm1234, %v1221, %v1224
      %v1243 = vsel %vm1237, %v1230, 920167782
      %v1244 = vsel %vm1236, %v1227, %v1243
      %v1245 = vsel %vm1235, %v1242, %v1244
      %v1246 = vsel %vm1234, %v1224, %v1227
      %v1247 = vsel %vm1237, %v1233, 1326507024
      %v1248 = vsel %vm1236, %v1230, %v1247
      %v1249 = vsel %vm1235, %v1246, %v1248
      %v1250 = vshll.u32 %v1210, 8
      %v1251 = vand.u32 %v1250, 65535
      %v1252 = vshrl.u32 %v1250, 16
      %v1253 = vand.u32 %v1249, 65535
      %v1254 = vshrl.u32 %v1249, 16
      %v1255 = vmul.u32 %v1251, %v1253
      %v1256 = vmul.u32 %v1251, %v1254
      %v1257 = vmul.u32 %v1252, %v1253
      %v1258 = vmul.u32 %v1252, %v1254
      %v1259 = vshll.u32 %v1256, 16
      %v1260 = vshrl.u32 %v1256, 16
      %v1261 = vshll.u32 %v1257, 16
      %v1262 = vshrl.u32 %v1257, 16
      %vm1263 = vc.u32 %v1255, %v1259
      %v1264 = vsel %vm1263, 1, 0
      %v1265 = vadd.s32 %v1255, %v1259
      %v1266 = vadd.s32 %v1258, %v1264
      %vm1267 = vc.u32 %v1265, %v1261
      %v1268 = vsel %vm1267, 1, 0
      %v1269 = vadd.s32 %v1265, %v1261
      %v1270 = vadd.s32 %v1266, %v1268
      %v1271 = vadd.s32 %v1270, %v1260
      %v1272 = vadd.s32 %v1271, %v1262
      %v1273 = vand.u32 %v1250, 65535
      %v1274 = vshrl.u32 %v1250, 16
      %v1275 = vand.u32 %v1245, 65535
      %v1276 = vshrl.u32 %v1245, 16
      %v1277 = vmul.u32 %v1273, %v1275
      %v1278 = vmul.u32 %v1273, %v1276
      %v1279 = vmul.u32 %v1274, %v1275
      %v1280 = vmul.u32 %v1274, %v1276
      %v1281 = vshll.u32 %v1278, 16
      %v1282 = vshrl.u32 %v1278, 16
      %v1283 = vshll.u32 %v1279, 16
      %v1284 = vshrl.u32 %v1279, 16
      %vm1285 = vc.u32 %v1277, %v1281
      %v1286 = vsel %vm1285, 1, 0
      %v1287 = vadd.s32 %v1277, %v1281
      %v1288 = vadd.s32 %v1280, %v1286
      %vm1289 = vc.u32 %v1287, %v1283
      %v1290 = vsel %vm1289, 1, 0
      %v1291 = vadd.s32 %v1287, %v1283
      %v1292 = vadd.s32 %v1288, %v1290
      %v1293 = vadd.s32 %v1292, %v1282
      %v1294 = vadd.s32 %v1293, %v1284
      %v1295 = vmul.u32 %v1250, %v1241
      %v1296 = vadd.s32 %v1272, %v1291
      %vm1297 = vc.u32 %v1272, %v1291
      %v1298 = vadd.s32 %v1294, 1
      %v1299 = vsel %vm1297, %v1298, %v1294
      %v1300 = vadd.s32 %v1295, %v1299
      %v1301 = vadd.s32 %v1300, 536870912
      %v1302 = vshrl.u32 %v1301, 30
      %v1303 = vshll.u32 %v1302, 30
      %v1304 = vsub.s32 %v1300, %v1303
      %vm1305 = vcmp.lt.s32.totalorder %v1304, 0
      %v1306 = vsub.s32 0, %v1304
      %v1307 = vsel %vm1305, %v1306, %v1304
      %v1308 = vclz %v1307
      %v1309 = vsub.s32 %v1308, 2
      %vm1310 = vcmp.gt.s32.totalorder 0, %v1309
      %v1311 = vsel %vm1310, 0, %v1309
      %v1312 = vsub.s32 32, %v1311
      %v1313 = vshll.u32 %v1304, %v1311
      %v1314 = vshrl.u32 %v1296, %v1312
      %v1315 = vor.u32 %v1313, %v1314
      %v1316 = vsub.s32 4294967266, %v1311
      %v1317 = vadd.s32 %v1316, 127
      %v1318 = vshll.u32 %v1317, 23
      %v1319 = vor.u32 4788187, %v1318
      %v1320 = vand.u32 2147483647, %v1319
      %v1322 = vcvt.s32.f32 %v1315
      %v1323 = vmul.f32 %v1322, %v1320
      %v1324 = vxor.u32 %v1323, 2147483648
      %v1325 = vsel %vm1204, %v1324, %v1323
      %v1326 = vsub.s32 4, %v1302
      %v1327 = vsel %vm1204, %v1326, %v1302
      %v1328 = vsel %vm1203, %v737, %v1325
      %v1329 = vsel %vm1203, 0, %v1327
      %v1330 = vmul.f32 %v1328, %v1328
      %v1331 = vmul.f32 %v1330, -0.001358992
      %v1332 = vadd.f32 %v1331, 0.041655596
      %v1333 = vmul.f32 %v1330, %v1332
      %v1334 = vadd.f32 %v1333, -0.4999988
      %v1335 = vmul.f32 %v1330, %v1334
      %v1336 = vadd.f32 1.0, %v1335
      %v1337 = vmul.f32 %v1328, %v1328
      %v1338 = vmul.f32 %v1337, -0.00019511016
      %v1339 = vadd.f32 %v1338, 0.008332121
      %v1340 = vmul.f32 %v1337, %v1339
      %v1341 = vadd.f32 %v1340, -0.16666654
      %v1342 = vmul.f32 %v1337, %v1341
      %v1343 = vadd.f32 %v1342, 1.0
      %v1344 = vmul.f32 %v1343, %v1328
      %vm1345 = vweird.f32 %v737
      %v1346 = vand.u32 %v1329, 3
      %vm1347 = vcmp.lt.s32.totalorder %v1346, 2
      %vm1348 = vcmp.eq.s32.totalorder %v1346, 0
      %v1349 = vxor.u32 %v1344, 2147483648
      %v1350 = vsel %vm1348, %v1336, %v1349
      %vm1351 = vcmp.eq.s32.totalorder %v1346, 2
      %v1352 = vxor.u32 %v1336, 2147483648
      %v1353 = vsel %vm1351, %v1352, %v1344
      %v1354 = vsel %vm1347, %v1350, %v1353
      %v1355 = vsel %vm1345, nan, %v1354
      %s1356 = sadd.s32 %s31, 528
      %s1357 = scalar_lea.vmem [#allocation5], %s1356
      %1358 = vst [vmem:[%s1357] sm:$0xff] %v892
      %1359 = vst [vmem:[%s1357 + $0x8] sm:$0xff] %v1047
      %s1360 = sadd.s32 %s31, 576
      %s1361 = scalar_lea.vmem [#allocation5], %s1360
      %1362 = vst [vmem:[%s1361] sm:$0xff] %v1201
      %1363 = vst [vmem:[%s1361 + $0x8] sm:$0xff] %v1355
      %v1364 = vmul.f32 %v892, 2.0
      %v1365 = vmul.f32 %v1047, 2.0
      %v1366 = vmul.f32 %v1364, %v1201
      %v1367 = vmul.f32 %v1365, %v1355
      %v1368 = vmul.f32 %v1201, %v1201
      %v1369 = vmul.f32 %v1355, %v1355
      %v1370 = vmul.f32 %v892, %v892
      %v1371 = vmul.f32 %v1047, %v1047
      %v1372 = vsub.f32 %v1368, %v1370
      %v1373 = vsub.f32 %v1369, %v1371
      %s1374 = sadd.s32 %s31, 624
      %s1375 = scalar_lea.vmem [#allocation5], %s1374
      %1376 = vst [vmem:[%s1375] sm:$0xff] %v1366
      %1377 = vst [vmem:[%s1375 + $0x8] sm:$0xff] %v1367
      %s1378 = sadd.s32 %s31, 672
      %s1379 = scalar_lea.vmem [#allocation5], %s1378
      %1380 = vst [vmem:[%s1379] sm:$0xff] %v1372
      %1381 = vst [vmem:[%s1379 + $0x8] sm:$0xff] %v1373
      %v1382 = vmul.f32 %v1366, 2.0
      %v1383 = vmul.f32 %v1367, 2.0
      %v1384 = vmul.f32 %v1382, %v1372
      %v1385 = vmul.f32 %v1383, %v1373
      %v1386 = vmul.f32 %v1372, %v1372
      %v1387 = vmul.f32 %v1373, %v1373
      %v1388 = vmul.f32 %v1366, %v1366
      %v1389 = vmul.f32 %v1367, %v1367
      %v1390 = vsub.f32 %v1386, %v1388
      %v1391 = vsub.f32 %v1387, %v1389
      %s1392 = sadd.s32 %s31, 720
      %s1393 = scalar_lea.vmem [#allocation5], %s1392
      %1394 = vst [vmem:[%s1393] sm:$0xff] %v1384
      %1395 = vst [vmem:[%s1393 + $0x8] sm:$0xff] %v1385
      %s1396 = sadd.s32 %s31, 768
      %s1397 = scalar_lea.vmem [#allocation5], %s1396
      %1398 = vst [vmem:[%s1397] sm:$0xff] %v1390
      %1399 = vst [vmem:[%s1397 + $0x8] sm:$0xff] %v1391
      %v1400 = vmul.f32 %v1384, 2.0
      %v1401 = vmul.f32 %v1385, 2.0
      %v1402 = vmul.f32 %v1400, %v1390
      %v1403 = vmul.f32 %v1401, %v1391
      %v1404 = vmul.f32 %v1390, %v1390
      %v1405 = vmul.f32 %v1391, %v1391
      %v1406 = vmul.f32 %v1384, %v1384
      %v1407 = vmul.f32 %v1385, %v1385
      %v1408 = vsub.f32 %v1404, %v1406
      %v1409 = vsub.f32 %v1405, %v1407
      %s1410 = sadd.s32 %s31, 816
      %s1411 = scalar_lea.vmem [#allocation5], %s1410
      %1412 = vst [vmem:[%s1411] sm:$0xff] %v1402
      %1413 = vst [vmem:[%s1411 + $0x8] sm:$0xff] %v1403
      %s1414 = sadd.s32 %s31, 864
      %s1415 = scalar_lea.vmem [#allocation5], %s1414
      %1416 = vst [vmem:[%s1415] sm:$0xff] %v1408
      %1417 = vst [vmem:[%s1415 + $0x8] sm:$0xff] %v1409
      %v1418 = vmul.f32 %v1402, 2.0
      %v1419 = vmul.f32 %v1403, 2.0
      %v1420 = vmul.f32 %v1418, %v1408
      %v1421 = vmul.f32 %v1419, %v1409
      %v1422 = vmul.f32 %v1408, %v1408
      %v1423 = vmul.f32 %v1409, %v1409
      %v1424 = vmul.f32 %v1402, %v1402
      %v1425 = vmul.f32 %v1403, %v1403
      %v1426 = vsub.f32 %v1422, %v1424
      %v1427 = vsub.f32 %v1423, %v1425
      %s1428 = sadd.s32 %s31, 912
      %s1429 = scalar_lea.vmem [#allocation5], %s1428
      %1430 = vst [vmem:[%s1429] sm:$0xff] %v1420
      %1431 = vst [vmem:[%s1429 + $0x8] sm:$0xff] %v1421
      %s1432 = sadd.s32 %s31, 960
      %s1433 = scalar_lea.vmem [#allocation5], %s1432
      %1434 = vst [vmem:[%s1433] sm:$0xff] %v1426
      %1435 = vst [vmem:[%s1433 + $0x8] sm:$0xff] %v1427
    $region14: #{tpu_custom_call.1} parent=1 // loop_footer
      %s30 = sadd.s32 1, %s26
    $region15: #{tpu_custom_call.1} parent=1 // loop_footer_branch
      %25 = sbr.rel target = $region11
    $region16: #{tpu_custom_call.1} parent=1 // loop_exit
      _
    // Predicated region
    $region17: #{tpu_custom_call.1} parent=1 // pred_check
      _
    $region18: #{tpu_custom_call.1} parent=1 // pred_check_branch
      %1437 = sbr.rel (0) target = $region20
    $region19: #{tpu_custom_call.1} parent=1 // pred_region
      %1439 = vsyncadd [#allocation4], 0
      %s1440 = sshll.u32 [#allocation5], 4
      %s1441 = int_to_ptr.vmem [resolvable:$true] %s1440
      %s1442 = sshll.u32 %s1, 4
      %s1443 = int_to_ptr.hbm [resolvable:$true] %s1442
      %1448 = dma.vmem_to_hbm [thread:$0]  %s1441, 16128, %s1443, [#allocation4], 128, 128, 8
    $region20: #{tpu_custom_call.1} parent=1 // pred_fallthru
      _
    // Predicated region
    $region21: #{tpu_custom_call.1} parent=1 // pred_check
      _
    $region22: #{tpu_custom_call.1} parent=1 // pred_check_branch
      %1450 = sbr.rel (0) target = $region24
    $region23: #{tpu_custom_call.1} parent=1 // pred_region
      %1452 = dma.done [#allocation4], 16128
    $region24: #{tpu_custom_call.1} parent=1 // pred_fallthru
      _
    %1453 = vsyncpa [#allocation3], 1
    %1454 = vsyncpa [#allocation4], 1

</llo_original>
